<compile_context>
chip_gen: v7x
topology: tpu7x:2x2x1
jax: 0.10.0
libtpu: 0.0.40
codegen_flags: <defaults>
</compile_context>

<pallas_src>
import functools

import jax
import jax.numpy as jnp
from jax.experimental import pallas as pl
from jax.experimental.pallas import tpu as pltpu


# ----------------------------- fused Pallas kernel -----------------------------

def dlsom_fused_kernel(p_ref, w_ref, b_ref, n4_ref, nsum_ref, w2_ref, lab_ref, o_ref):
    # p_ref   : (B, C*9, HW)  im2col patches (row = c*9 + tap, col = h*W + w)
    # w_ref   : (OC, C*9)     conv weight, torch OIHW flattened
    # b_ref   : (OC, 1)       conv bias
    # n4_ref  : (OC, HW, K)   SOM neuron weights, feature index = oc*HW + hw
    # nsum_ref: (1, K)        precomputed sum_d neuron[k, d]
    # w2_ref  : (1, K)        precomputed ||neuron_k||^2
    # lab_ref : (1, K) int32  per-neuron class label
    # o_ref   : (B, NC)       one-hot class output
    B = p_ref.shape[0]
    OC, HW, K = n4_ref.shape
    NC = o_ref.shape[1]

    # --- DL feature extractor: Conv2d(C->OC, 3x3, pad=1) + ReLU as one matmul per sample ---
    # Output tiles are (OC, HW=256): lane-dense and already in NCHW flatten order.
    zs = []
    mn = None
    mx = None
    for bi in range(B):                     # B is tiny and static -> unrolled
        z = jnp.dot(w_ref[...], p_ref[bi], preferred_element_type=jnp.float32)  # (OC, HW)
        z = jnp.maximum(z + b_ref[...], 0.0)
        zs.append(z)
        zmn = jnp.min(jnp.min(z, axis=-1, keepdims=True), axis=-2, keepdims=True)  # (1, 1)
        zmx = jnp.max(jnp.max(z, axis=-1, keepdims=True), axis=-2, keepdims=True)  # (1, 1)
        mn = zmn if mn is None else jnp.minimum(mn, zmn)
        mx = zmx if mx is None else jnp.maximum(mx, zmx)

    # --- NormalizeMinMax folded into the distance ---
    # f_b = (z_b - mn) * inv  =>  <f_b, n_k> = inv * (<z_b, n_k> - mn * sum(n_k))
    # TODO(synk): unguarded when max == min (matches the reference's plain division); the
    #             reference NormalizeMinMax may track running min/max across batches -- here it
    #             is computed per forward call on the current tensor.
    inv = pl.reciprocal(mx - mn, approx=True)            # (1, 1), EUP reciprocal

    # --- LabelledSOM cross term: one (B, HW) @ (HW, K) MXU matmul per conv channel ---
    cross = jnp.zeros((B, K), jnp.float32)
    for oc in range(OC):
        zrows = jnp.concatenate([zs[bi][oc:oc + 1, :] for bi in range(B)], axis=0)  # (B, HW)
        cross = cross + jnp.dot(zrows, n4_ref[oc], preferred_element_type=jnp.float32)

    # dist (up to the argmin-invariant per-row constant ||f_b||^2):
    dist = w2_ref[...] - 2.0 * inv * (cross - mn * nsum_ref[...])                # (B, K)

    # --- BMU argmin (first match, like torch.argmin) + per-neuron label lookup + one-hot ---
    iota_k = jax.lax.broadcasted_iota(jnp.int32, (B, K), 1)
    iota_c = jax.lax.broadcasted_iota(jnp.int32, (B, NC), 1)
    minv = jnp.min(dist, axis=-1, keepdims=True)                                 # (B, 1)
    bmu = jnp.min(jnp.where(dist <= minv, iota_k, K), axis=-1, keepdims=True)    # (B, 1)
    cls = jnp.min(jnp.where(iota_k == bmu, lab_ref[...], NC),
                  axis=-1, keepdims=True)                                        # (B, 1) label
    o_ref[...] = (iota_c == cls).astype(jnp.float32)                             # (B, NC) one-hot


def dlsom_forward(x, params, *, num_classes):
    b = x.shape[0]
    patches = im2col_nchw(x)                      # (B, C*9, H*W) -- small XLA glue, fused by XLA
    w_flat = params["conv_w_flat"]                # (OC, C*9)
    bias = params["conv_b"]                       # (OC, 1)
    n4 = params["neurons_ohk"]                    # (OC, H*W, K)
    nsum = params["neurons_colsum"]               # (1, K)
    w2 = params["neurons_sqnorm"]                 # (1, K)
    lab = params["labels_cls"]                    # (1, K) int32
    ckk, hw = patches.shape[1], patches.shape[2]
    oc, _, k = n4.shape

    return pl.pallas_call(
        dlsom_fused_kernel,
        out_shape=jax.ShapeDtypeStruct((b, num_classes), jnp.float32),
        grid_spec=pltpu.PrefetchScalarGridSpec(
            num_scalar_prefetch=0,
            grid=(1,),
            in_specs=[
                pl.BlockSpec((b, ckk, hw), lambda i: (0, 0, 0)),
                pl.BlockSpec((oc, ckk), lambda i: (0, 0)),
                pl.BlockSpec((oc, 1), lambda i: (0, 0)),
                pl.BlockSpec((oc, hw, k), lambda i: (0, 0, 0)),
                pl.BlockSpec((1, k), lambda i: (0, 0)),
                pl.BlockSpec((1, k), lambda i: (0, 0)),
                pl.BlockSpec((1, k), lambda i: (0, 0)),
            ],
            out_specs=pl.BlockSpec((b, num_classes), lambda i: (0, 0)),
        ),
        compiler_params=pltpu.CompilerParams(
            dimension_semantics=("arbitrary",),   # single grid point; do not shard across cores
        ),
    )(patches, w_flat, bias, n4, nsum, w2, lab)


# ------------------------------ JAX glue ----------------------------------

def im2col_nchw(x, kh=3, kw=3, pad=1):
    """(B, C, H, W) -> (B, C*kh*kw, H*W); row index c*kh*kw + (i*kw+j) matches the
    flattened torch OIHW conv weight, column index = h*W + w."""
    b, c, h, w = x.shape
    xp = jnp.pad(x, ((0, 0), (0, 0), (pad, pad), (pad, pad)))
    cols = [xp[:, :, i:i + h, j:j + w] for i in range(kh) for j in range(kw)]
    p = jnp.stack(cols, axis=2)                   # (B, C, kh*kw, H, W)
    return p.reshape(b, c * kh * kw, h * w)       # (B, C*kh*kw, H*W)


def init_params(key, in_ch=4, out_ch=8, hw=16, neurons=(8, 8), num_classes=4):
    """Deterministic synthetic parameters (DL conv + SOM neurons + neuron labels)."""
    k1, k2, k3 = jax.random.split(key, 3)
    conv_w = jax.random.normal(k1, (out_ch, in_ch, 3, 3), jnp.float32) * 0.1   # torch OIHW layout
    conv_b = jax.random.normal(k2, (out_ch,), jnp.float32) * 0.1
    d = out_ch * hw * hw
    k = neurons[0] * neurons[1]
    som_w = jax.random.uniform(k3, (k, d), jnp.float32)      # neurons live in [0,1] (normalized space)
    labels = (jnp.arange(k) % num_classes).astype(jnp.int32)  # deterministic per-neuron class labels
    return {
        "conv_w_flat": conv_w.reshape(out_ch, in_ch * 9),                       # (OC, C*9)
        "conv_b": conv_b.reshape(out_ch, 1),                                    # (OC, 1)
        # parameter-only preprocessing hoisted out of the forward pass:
        "neurons_ohk": som_w.reshape(k, out_ch, hw * hw).transpose(1, 2, 0),    # (OC, HW, K)
        "neurons_colsum": jnp.sum(som_w, axis=1).reshape(1, k),                 # (1, K)
        "neurons_sqnorm": jnp.sum(som_w * som_w, axis=1).reshape(1, k),         # (1, K)
        "labels_cls": labels.reshape(1, k),                                     # (1, K) int32
    }


if __name__ == "__main__":
    key = jax.random.PRNGKey(0)
    kx, kp = jax.random.split(key)
    x = jax.random.normal(kx, (2, 4, 16, 16), jnp.float32)   # NCHW, like the PyTorch module input
    params = init_params(kp)

    fwd = jax.jit(functools.partial(dlsom_forward, num_classes=4))
    out = jax.block_until_ready(fwd(x, params))
    assert out.shape == (2, 4) and out.dtype == jnp.float32
    print("KERNEL_OK")
</pallas_src>

<mosaic_0001>
module attributes {stable_mosaic.version = 11 : i64} {
  func.func @dlsom_fused_kernel(%arg0: i32, %arg1: memref<2x36x256xf32, #tpu.memory_space<vmem>>, %arg2: memref<8x36xf32, #tpu.memory_space<vmem>>, %arg3: memref<8x1xf32, #tpu.memory_space<vmem>>, %arg4: memref<8x256x64xf32, #tpu.memory_space<vmem>>, %arg5: memref<1x64xf32, #tpu.memory_space<vmem>>, %arg6: memref<1x64xf32, #tpu.memory_space<vmem>>, %arg7: memref<1x64xi32, #tpu.memory_space<vmem>>, %arg8: memref<2x4xf32, #tpu.memory_space<vmem>>) attributes {dimension_semantics = [#tpu.dimension_semantics<arbitrary>], iteration_bounds = array<i64: 1>, scalar_prefetch = 0 : i64, scratch_operands = 0 : i64, tpu.core_type = #tpu.core_type<tc>, window_params = [{pipeline_mode = #tpu.pipeline_mode<synchronous>, transform_indices = @transform_0, window_bounds = array<i64: 2, 36, 256>}, {pipeline_mode = #tpu.pipeline_mode<synchronous>, transform_indices = @transform_1, window_bounds = array<i64: 8, 36>}, {pipeline_mode = #tpu.pipeline_mode<synchronous>, transform_indices = @transform_2, window_bounds = array<i64: 8, 1>}, {pipeline_mode = #tpu.pipeline_mode<synchronous>, transform_indices = @transform_3, window_bounds = array<i64: 8, 256, 64>}, {pipeline_mode = #tpu.pipeline_mode<synchronous>, transform_indices = @transform_4, window_bounds = array<i64: 1, 64>}, {pipeline_mode = #tpu.pipeline_mode<synchronous>, transform_indices = @transform_5, window_bounds = array<i64: 1, 64>}, {pipeline_mode = #tpu.pipeline_mode<synchronous>, transform_indices = @transform_6, window_bounds = array<i64: 1, 64>}, {pipeline_mode = #tpu.pipeline_mode<synchronous>, transform_indices = @transform_7, window_bounds = array<i64: 2, 4>}]} {
    %c0 = arith.constant 0 : index
    %c0_0 = arith.constant 0 : index
    %0 = vector.load %arg2[%c0, %c0_0] : memref<8x36xf32, #tpu.memory_space<vmem>>, vector<8x36xf32>
    %c0_1 = arith.constant 0 : index
    %c0_2 = arith.constant 0 : index
    %c0_3 = arith.constant 0 : index
    %1 = vector.load %arg1[%c0_1, %c0_2, %c0_3] : memref<2x36x256xf32, #tpu.memory_space<vmem>>, vector<1x36x256xf32>
    %2 = vector.shape_cast %1 : vector<1x36x256xf32> to vector<36x256xf32>
    %cst = arith.constant dense<0.000000e+00> : vector<8x256xf32>
    %3 = tpu.matmul %0, %2, %cst {dimension_numbers = #tpu.dot_dimension_numbers<[1], [0], [0], [1], [0, 0, 1, 1], [], []>} : vector<8x36xf32>, vector<36x256xf32>, vector<8x256xf32> -> vector<8x256xf32>
    %c0_4 = arith.constant 0 : index
    %c0_5 = arith.constant 0 : index
    %4 = vector.load %arg3[%c0_4, %c0_5] : memref<8x1xf32, #tpu.memory_space<vmem>>, vector<8x1xf32>
    %5 = vector.broadcast %4 : vector<8x1xf32> to vector<8x256xf32>
    %6 = arith.addf %3, %5 : vector<8x256xf32>
    %cst_6 = arith.constant 0.000000e+00 : f32
    %7 = vector.broadcast %cst_6 : f32 to vector<8x256xf32>
    %8 = arith.maximumf %6, %7 : vector<8x256xf32>
    %cst_7 = arith.constant dense<0x7F800000> : vector<8xf32>
    %9 = vector.multi_reduction <minimumf>, %8, %cst_7 [1] : vector<8x256xf32> to vector<8xf32>
    %10 = vector.shape_cast %9 : vector<8xf32> to vector<8x1xf32>
    %cst_8 = arith.constant dense<0x7F800000> : vector<1xf32>
    %11 = vector.multi_reduction <minimumf>, %10, %cst_8 [0] : vector<8x1xf32> to vector<1xf32>
    %12 = vector.shape_cast %11 : vector<1xf32> to vector<1x1xf32>
    %cst_9 = arith.constant dense<0xFF800000> : vector<8xf32>
    %13 = vector.multi_reduction <maximumf>, %8, %cst_9 [1] : vector<8x256xf32> to vector<8xf32>
    %14 = vector.shape_cast %13 : vector<8xf32> to vector<8x1xf32>
    %cst_10 = arith.constant dense<0xFF800000> : vector<1xf32>
    %15 = vector.multi_reduction <maximumf>, %14, %cst_10 [0] : vector<8x1xf32> to vector<1xf32>
    %16 = vector.shape_cast %15 : vector<1xf32> to vector<1x1xf32>
    %c0_11 = arith.constant 0 : index
    %c0_12 = arith.constant 0 : index
    %17 = vector.load %arg2[%c0_11, %c0_12] : memref<8x36xf32, #tpu.memory_space<vmem>>, vector<8x36xf32>
    %c1 = arith.constant 1 : index
    %c0_13 = arith.constant 0 : index
    %c0_14 = arith.constant 0 : index
    %18 = vector.load %arg1[%c1, %c0_13, %c0_14] : memref<2x36x256xf32, #tpu.memory_space<vmem>>, vector<1x36x256xf32>
    %19 = vector.shape_cast %18 : vector<1x36x256xf32> to vector<36x256xf32>
    %cst_15 = arith.constant dense<0.000000e+00> : vector<8x256xf32>
    %20 = tpu.matmul %17, %19, %cst_15 {dimension_numbers = #tpu.dot_dimension_numbers<[1], [0], [0], [1], [0, 0, 1, 1], [], []>} : vector<8x36xf32>, vector<36x256xf32>, vector<8x256xf32> -> vector<8x256xf32>
    %c0_16 = arith.constant 0 : index
    %c0_17 = arith.constant 0 : index
    %21 = vector.load %arg3[%c0_16, %c0_17] : memref<8x1xf32, #tpu.memory_space<vmem>>, vector<8x1xf32>
    %22 = vector.broadcast %21 : vector<8x1xf32> to vector<8x256xf32>
    %23 = arith.addf %20, %22 : vector<8x256xf32>
    %cst_18 = arith.constant 0.000000e+00 : f32
    %24 = vector.broadcast %cst_18 : f32 to vector<8x256xf32>
    %25 = arith.maximumf %23, %24 : vector<8x256xf32>
    %cst_19 = arith.constant dense<0x7F800000> : vector<8xf32>
    %26 = vector.multi_reduction <minimumf>, %25, %cst_19 [1] : vector<8x256xf32> to vector<8xf32>
    %27 = vector.shape_cast %26 : vector<8xf32> to vector<8x1xf32>
    %cst_20 = arith.constant dense<0x7F800000> : vector<1xf32>
    %28 = vector.multi_reduction <minimumf>, %27, %cst_20 [0] : vector<8x1xf32> to vector<1xf32>
    %29 = vector.shape_cast %28 : vector<1xf32> to vector<1x1xf32>
    %cst_21 = arith.constant dense<0xFF800000> : vector<8xf32>
    %30 = vector.multi_reduction <maximumf>, %25, %cst_21 [1] : vector<8x256xf32> to vector<8xf32>
    %31 = vector.shape_cast %30 : vector<8xf32> to vector<8x1xf32>
    %cst_22 = arith.constant dense<0xFF800000> : vector<1xf32>
    %32 = vector.multi_reduction <maximumf>, %31, %cst_22 [0] : vector<8x1xf32> to vector<1xf32>
    %33 = vector.shape_cast %32 : vector<1xf32> to vector<1x1xf32>
    %34 = arith.minimumf %12, %29 : vector<1x1xf32>
    %35 = arith.maximumf %16, %33 : vector<1x1xf32>
    %36 = arith.subf %35, %34 : vector<1x1xf32>
    %37 = tpu.reciprocal %36 {approx = true} : vector<1x1xf32> -> vector<1x1xf32>
    %cst_23 = arith.constant 0.000000e+00 : f32
    %38 = vector.broadcast %cst_23 : f32 to vector<2x64xf32>
    %39 = vector.extract_strided_slice %8 {offsets = [0, 0], sizes = [1, 256], strides = [1, 1]} : vector<8x256xf32> to vector<1x256xf32>
    %40 = vector.extract_strided_slice %25 {offsets = [0, 0], sizes = [1, 256], strides = [1, 1]} : vector<8x256xf32> to vector<1x256xf32>
    %41 = tpu.concatenate %39, %40 in 0 : vector<1x256xf32>, vector<1x256xf32> -> vector<2x256xf32>
    %c0_24 = arith.constant 0 : index
    %c0_25 = arith.constant 0 : index
    %c0_26 = arith.constant 0 : index
    %42 = vector.load %arg4[%c0_24, %c0_25, %c0_26] : memref<8x256x64xf32, #tpu.memory_space<vmem>>, vector<1x256x64xf32>
    %43 = vector.shape_cast %42 : vector<1x256x64xf32> to vector<256x64xf32>
    %cst_27 = arith.constant dense<0.000000e+00> : vector<2x64xf32>
    %44 = tpu.matmul %41, %43, %cst_27 {dimension_numbers = #tpu.dot_dimension_numbers<[1], [0], [0], [1], [0, 0, 1, 1], [], []>} : vector<2x256xf32>, vector<256x64xf32>, vector<2x64xf32> -> vector<2x64xf32>
    %45 = arith.addf %38, %44 : vector<2x64xf32>
    %46 = vector.extract_strided_slice %8 {offsets = [1, 0], sizes = [1, 256], strides = [1, 1]} : vector<8x256xf32> to vector<1x256xf32>
    %47 = vector.extract_strided_slice %25 {offsets = [1, 0], sizes = [1, 256], strides = [1, 1]} : vector<8x256xf32> to vector<1x256xf32>
    %48 = tpu.concatenate %46, %47 in 0 : vector<1x256xf32>, vector<1x256xf32> -> vector<2x256xf32>
    %c1_28 = arith.constant 1 : index
    %c0_29 = arith.constant 0 : index
    %c0_30 = arith.constant 0 : index
    %49 = vector.load %arg4[%c1_28, %c0_29, %c0_30] : memref<8x256x64xf32, #tpu.memory_space<vmem>>, vector<1x256x64xf32>
    %50 = vector.shape_cast %49 : vector<1x256x64xf32> to vector<256x64xf32>
    %cst_31 = arith.constant dense<0.000000e+00> : vector<2x64xf32>
    %51 = tpu.matmul %48, %50, %cst_31 {dimension_numbers = #tpu.dot_dimension_numbers<[1], [0], [0], [1], [0, 0, 1, 1], [], []>} : vector<2x256xf32>, vector<256x64xf32>, vector<2x64xf32> -> vector<2x64xf32>
    %52 = arith.addf %45, %51 : vector<2x64xf32>
    %53 = vector.extract_strided_slice %8 {offsets = [2, 0], sizes = [1, 256], strides = [1, 1]} : vector<8x256xf32> to vector<1x256xf32>
    %54 = vector.extract_strided_slice %25 {offsets = [2, 0], sizes = [1, 256], strides = [1, 1]} : vector<8x256xf32> to vector<1x256xf32>
    %55 = tpu.concatenate %53, %54 in 0 : vector<1x256xf32>, vector<1x256xf32> -> vector<2x256xf32>
    %c2 = arith.constant 2 : index
    %c0_32 = arith.constant 0 : index
    %c0_33 = arith.constant 0 : index
    %56 = vector.load %arg4[%c2, %c0_32, %c0_33] : memref<8x256x64xf32, #tpu.memory_space<vmem>>, vector<1x256x64xf32>
    %57 = vector.shape_cast %56 : vector<1x256x64xf32> to vector<256x64xf32>
    %cst_34 = arith.constant dense<0.000000e+00> : vector<2x64xf32>
    %58 = tpu.matmul %55, %57, %cst_34 {dimension_numbers = #tpu.dot_dimension_numbers<[1], [0], [0], [1], [0, 0, 1, 1], [], []>} : vector<2x256xf32>, vector<256x64xf32>, vector<2x64xf32> -> vector<2x64xf32>
    %59 = arith.addf %52, %58 : vector<2x64xf32>
    %60 = vector.extract_strided_slice %8 {offsets = [3, 0], sizes = [1, 256], strides = [1, 1]} : vector<8x256xf32> to vector<1x256xf32>
    %61 = vector.extract_strided_slice %25 {offsets = [3, 0], sizes = [1, 256], strides = [1, 1]} : vector<8x256xf32> to vector<1x256xf32>
    %62 = tpu.concatenate %60, %61 in 0 : vector<1x256xf32>, vector<1x256xf32> -> vector<2x256xf32>
    %c3 = arith.constant 3 : index
    %c0_35 = arith.constant 0 : index
    %c0_36 = arith.constant 0 : index
    %63 = vector.load %arg4[%c3, %c0_35, %c0_36] : memref<8x256x64xf32, #tpu.memory_space<vmem>>, vector<1x256x64xf32>
    %64 = vector.shape_cast %63 : vector<1x256x64xf32> to vector<256x64xf32>
    %cst_37 = arith.constant dense<0.000000e+00> : vector<2x64xf32>
    %65 = tpu.matmul %62, %64, %cst_37 {dimension_numbers = #tpu.dot_dimension_numbers<[1], [0], [0], [1], [0, 0, 1, 1], [], []>} : vector<2x256xf32>, vector<256x64xf32>, vector<2x64xf32> -> vector<2x64xf32>
    %66 = arith.addf %59, %65 : vector<2x64xf32>
    %67 = vector.extract_strided_slice %8 {offsets = [4, 0], sizes = [1, 256], strides = [1, 1]} : vector<8x256xf32> to vector<1x256xf32>
    %68 = vector.extract_strided_slice %25 {offsets = [4, 0], sizes = [1, 256], strides = [1, 1]} : vector<8x256xf32> to vector<1x256xf32>
    %69 = tpu.concatenate %67, %68 in 0 : vector<1x256xf32>, vector<1x256xf32> -> vector<2x256xf32>
    %c4 = arith.constant 4 : index
    %c0_38 = arith.constant 0 : index
    %c0_39 = arith.constant 0 : index
    %70 = vector.load %arg4[%c4, %c0_38, %c0_39] : memref<8x256x64xf32, #tpu.memory_space<vmem>>, vector<1x256x64xf32>
    %71 = vector.shape_cast %70 : vector<1x256x64xf32> to vector<256x64xf32>
    %cst_40 = arith.constant dense<0.000000e+00> : vector<2x64xf32>
    %72 = tpu.matmul %69, %71, %cst_40 {dimension_numbers = #tpu.dot_dimension_numbers<[1], [0], [0], [1], [0, 0, 1, 1], [], []>} : vector<2x256xf32>, vector<256x64xf32>, vector<2x64xf32> -> vector<2x64xf32>
    %73 = arith.addf %66, %72 : vector<2x64xf32>
    %74 = vector.extract_strided_slice %8 {offsets = [5, 0], sizes = [1, 256], strides = [1, 1]} : vector<8x256xf32> to vector<1x256xf32>
    %75 = vector.extract_strided_slice %25 {offsets = [5, 0], sizes = [1, 256], strides = [1, 1]} : vector<8x256xf32> to vector<1x256xf32>
    %76 = tpu.concatenate %74, %75 in 0 : vector<1x256xf32>, vector<1x256xf32> -> vector<2x256xf32>
    %c5 = arith.constant 5 : index
    %c0_41 = arith.constant 0 : index
    %c0_42 = arith.constant 0 : index
    %77 = vector.load %arg4[%c5, %c0_41, %c0_42] : memref<8x256x64xf32, #tpu.memory_space<vmem>>, vector<1x256x64xf32>
    %78 = vector.shape_cast %77 : vector<1x256x64xf32> to vector<256x64xf32>
    %cst_43 = arith.constant dense<0.000000e+00> : vector<2x64xf32>
    %79 = tpu.matmul %76, %78, %cst_43 {dimension_numbers = #tpu.dot_dimension_numbers<[1], [0], [0], [1], [0, 0, 1, 1], [], []>} : vector<2x256xf32>, vector<256x64xf32>, vector<2x64xf32> -> vector<2x64xf32>
    %80 = arith.addf %73, %79 : vector<2x64xf32>
    %81 = vector.extract_strided_slice %8 {offsets = [6, 0], sizes = [1, 256], strides = [1, 1]} : vector<8x256xf32> to vector<1x256xf32>
    %82 = vector.extract_strided_slice %25 {offsets = [6, 0], sizes = [1, 256], strides = [1, 1]} : vector<8x256xf32> to vector<1x256xf32>
    %83 = tpu.concatenate %81, %82 in 0 : vector<1x256xf32>, vector<1x256xf32> -> vector<2x256xf32>
    %c6 = arith.constant 6 : index
    %c0_44 = arith.constant 0 : index
    %c0_45 = arith.constant 0 : index
    %84 = vector.load %arg4[%c6, %c0_44, %c0_45] : memref<8x256x64xf32, #tpu.memory_space<vmem>>, vector<1x256x64xf32>
    %85 = vector.shape_cast %84 : vector<1x256x64xf32> to vector<256x64xf32>
    %cst_46 = arith.constant dense<0.000000e+00> : vector<2x64xf32>
    %86 = tpu.matmul %83, %85, %cst_46 {dimension_numbers = #tpu.dot_dimension_numbers<[1], [0], [0], [1], [0, 0, 1, 1], [], []>} : vector<2x256xf32>, vector<256x64xf32>, vector<2x64xf32> -> vector<2x64xf32>
    %87 = arith.addf %80, %86 : vector<2x64xf32>
    %88 = vector.extract_strided_slice %8 {offsets = [7, 0], sizes = [1, 256], strides = [1, 1]} : vector<8x256xf32> to vector<1x256xf32>
    %89 = vector.extract_strided_slice %25 {offsets = [7, 0], sizes = [1, 256], strides = [1, 1]} : vector<8x256xf32> to vector<1x256xf32>
    %90 = tpu.concatenate %88, %89 in 0 : vector<1x256xf32>, vector<1x256xf32> -> vector<2x256xf32>
    %c7 = arith.constant 7 : index
    %c0_47 = arith.constant 0 : index
    %c0_48 = arith.constant 0 : index
    %91 = vector.load %arg4[%c7, %c0_47, %c0_48] : memref<8x256x64xf32, #tpu.memory_space<vmem>>, vector<1x256x64xf32>
    %92 = vector.shape_cast %91 : vector<1x256x64xf32> to vector<256x64xf32>
    %cst_49 = arith.constant dense<0.000000e+00> : vector<2x64xf32>
    %93 = tpu.matmul %90, %92, %cst_49 {dimension_numbers = #tpu.dot_dimension_numbers<[1], [0], [0], [1], [0, 0, 1, 1], [], []>} : vector<2x256xf32>, vector<256x64xf32>, vector<2x64xf32> -> vector<2x64xf32>
    %94 = arith.addf %87, %93 : vector<2x64xf32>
    %c0_50 = arith.constant 0 : index
    %c0_51 = arith.constant 0 : index
    %95 = vector.load %arg6[%c0_50, %c0_51] : memref<1x64xf32, #tpu.memory_space<vmem>>, vector<1x64xf32>
    %cst_52 = arith.constant 2.000000e+00 : f32
    %96 = vector.broadcast %cst_52 : f32 to vector<1x1xf32>
    %97 = arith.mulf %96, %37 : vector<1x1xf32>
    %c0_53 = arith.constant 0 : index
    %c0_54 = arith.constant 0 : index
    %98 = vector.load %arg5[%c0_53, %c0_54] : memref<1x64xf32, #tpu.memory_space<vmem>>, vector<1x64xf32>
    %99 = vector.broadcast %34 : vector<1x1xf32> to vector<1x64xf32>
    %100 = arith.mulf %99, %98 : vector<1x64xf32>
    %101 = vector.broadcast %100 : vector<1x64xf32> to vector<2x64xf32>
    %102 = arith.subf %94, %101 : vector<2x64xf32>
    %103 = vector.broadcast %97 : vector<1x1xf32> to vector<2x64xf32>
    %104 = arith.mulf %103, %102 : vector<2x64xf32>
    %105 = vector.broadcast %95 : vector<1x64xf32> to vector<2x64xf32>
    %106 = arith.subf %105, %104 : vector<2x64xf32>
    %107 = tpu.iota {dimensions = array<i32: 1>} : vector<2x64xi32>
    %108 = tpu.iota {dimensions = array<i32: 1>} : vector<2x4xi32>
    %cst_55 = arith.constant dense<0x7F800000> : vector<2xf32>
    %109 = vector.multi_reduction <minimumf>, %106, %cst_55 [1] : vector<2x64xf32> to vector<2xf32>
    %110 = vector.shape_cast %109 : vector<2xf32> to vector<2x1xf32>
    %111 = vector.broadcast %110 : vector<2x1xf32> to vector<2x64xf32>
    %112 = arith.cmpf ole, %106, %111 : vector<2x64xf32>
    %c64_i32 = arith.constant 64 : i32
    %113 = vector.broadcast %c64_i32 : i32 to vector<2x64xi32>
    %114 = arith.select %112, %107, %113 : vector<2x64xi1>, vector<2x64xi32>
    %cst_56 = arith.constant dense<2147483647> : vector<2xi32>
    %115 = vector.multi_reduction <minsi>, %114, %cst_56 [1] : vector<2x64xi32> to vector<2xi32>
    %116 = vector.shape_cast %115 : vector<2xi32> to vector<2x1xi32>
    %117 = vector.broadcast %116 : vector<2x1xi32> to vector<2x64xi32>
    %118 = arith.cmpi eq, %107, %117 : vector<2x64xi32>
    %c0_57 = arith.constant 0 : index
    %c0_58 = arith.constant 0 : index
    %119 = vector.load %arg7[%c0_57, %c0_58] : memref<1x64xi32, #tpu.memory_space<vmem>>, vector<1x64xi32>
    %c4_i32 = arith.constant 4 : i32
    %120 = vector.shape_cast %119 : vector<1x64xi32> to vector<1x64xi32>
    %121 = vector.broadcast %120 : vector<1x64xi32> to vector<2x64xi32>
    %122 = vector.broadcast %c4_i32 : i32 to vector<2x64xi32>
    %123 = arith.select %118, %121, %122 : vector<2x64xi1>, vector<2x64xi32>
    %cst_59 = arith.constant dense<2147483647> : vector<2xi32>
    %124 = vector.multi_reduction <minsi>, %123, %cst_59 [1] : vector<2x64xi32> to vector<2xi32>
    %125 = vector.shape_cast %124 : vector<2xi32> to vector<2x1xi32>
    %126 = vector.broadcast %125 : vector<2x1xi32> to vector<2x4xi32>
    %127 = arith.cmpi eq, %108, %126 : vector<2x4xi32>
    %128 = arith.extui %127 : vector<2x4xi1> to vector<2x4xi32>
    %129 = arith.sitofp %128 : vector<2x4xi32> to vector<2x4xf32>
    %c0_60 = arith.constant 0 : index
    %c0_61 = arith.constant 0 : index
    %130 = vector.load %arg8[%c0_60, %c0_61] : memref<2x4xf32, #tpu.memory_space<vmem>>, vector<2x4xf32>
    tpu.vector_store %arg8[%c0_60, %c0_61], %129 {strides = array<i32>} : memref<2x4xf32, #tpu.memory_space<vmem>>, vector<2x4xf32>,
    return
  }
  func.func @transform_0(%arg0: i32) -> (i32, i32, i32) {
    %c0_i32 = arith.constant 0 : i32
    %c0_i32_0 = arith.constant 0 : i32
    %c0_i32_1 = arith.constant 0 : i32
    %c0_i32_2 = arith.constant 0 : i32
    return %c0_i32, %c0_i32_0, %c0_i32_1 : i32, i32, i32
  }
  func.func @transform_1(%arg0: i32) -> (i32, i32) {
    %c0_i32 = arith.constant 0 : i32
    %c0_i32_0 = arith.constant 0 : i32
    %c0_i32_1 = arith.constant 0 : i32
    return %c0_i32, %c0_i32_0 : i32, i32
  }
  func.func @transform_2(%arg0: i32) -> (i32, i32) {
    %c0_i32 = arith.constant 0 : i32
    %c0_i32_0 = arith.constant 0 : i32
    %c0_i32_1 = arith.constant 0 : i32
    return %c0_i32, %c0_i32_0 : i32, i32
  }
  func.func @transform_3(%arg0: i32) -> (i32, i32, i32) {
    %c0_i32 = arith.constant 0 : i32
    %c0_i32_0 = arith.constant 0 : i32
    %c0_i32_1 = arith.constant 0 : i32
    %c0_i32_2 = arith.constant 0 : i32
    return %c0_i32, %c0_i32_0, %c0_i32_1 : i32, i32, i32
  }
  func.func @transform_4(%arg0: i32) -> (i32, i32) {
    %c0_i32 = arith.constant 0 : i32
    %c0_i32_0 = arith.constant 0 : i32
    %c0_i32_1 = arith.constant 0 : i32
    return %c0_i32, %c0_i32_0 : i32, i32
  }
  func.func @transform_5(%arg0: i32) -> (i32, i32) {
    %c0_i32 = arith.constant 0 : i32
    %c0_i32_0 = arith.constant 0 : i32
    %c0_i32_1 = arith.constant 0 : i32
    return %c0_i32, %c0_i32_0 : i32, i32
  }
  func.func @transform_6(%arg0: i32) -> (i32, i32) {
    %c0_i32 = arith.constant 0 : i32
    %c0_i32_0 = arith.constant 0 : i32
    %c0_i32_1 = arith.constant 0 : i32
    return %c0_i32, %c0_i32_0 : i32, i32
  }
  func.func @transform_7(%arg0: i32) -> (i32, i32) {
    %c0_i32 = arith.constant 0 : i32
    %c0_i32_0 = arith.constant 0 : i32
    %c0_i32_1 = arith.constant 0 : i32
    return %c0_i32, %c0_i32_0 : i32, i32
  }
}

</mosaic_0001>

<llo_original>
// kernel: dlsom_forward.1
$region0: #{dlsom_forward.1}
  #allocation0 [shape = 'u32[]', space=smem, size = 0x4, offset = 0x4, fixed_abs, tag = 'smem constant byte address 0x4 - core index']
  #allocation1 [shape = 'u32[144,128]{1,0:T(1,128)}', space=vmem, size = 0x12000, scoped, tag = 'internal scratch']
  %s0 = inlined_call_operand.vmem [shape: f32[2,36,256], index: 0, kind: input, shape index: {}]
  %s1 = inlined_call_operand.vmem [shape: f32[8,36], index: 1, kind: input, shape index: {}]
  %s2 = inlined_call_operand.vmem [shape: f32[8,1], index: 2, kind: input, shape index: {}]
  %s3 = inlined_call_operand.vmem [shape: f32[8,256,64], index: 3, kind: input, shape index: {}]
  %s4 = inlined_call_operand.vmem [shape: f32[1,64], index: 4, kind: input, shape index: {}]
  %s5 = inlined_call_operand.vmem [shape: f32[1,64], index: 5, kind: input, shape index: {}]
  %s6 = inlined_call_operand.vmem [shape: s32[1,64], index: 6, kind: input, shape index: {}]
  %s7 = inlined_call_operand.hbm [shape: f32[2,4], index: 7, kind: output, shape index: {}]
  %s8 = sld [smem:[#allocation0]]
  $region38: #{dlsom_forward.1} parent=0
    _
  %s10 = ssub.s32 1, %s8
  %s11 = scalar_select 0, %s10, %s8
  $region1: #{dlsom_forward.1} parent=0
    #allocation2 [shape = 'u8[1024]{0}', space=vmem, size = 0x400, scoped, tag = 'output window, operand 0, single buffered']
    #allocation3 [shape = 's32[1]{0}', space=sflag, size = 0x4, scoped, tag = 'scoped memory for dlsom_forward.1']
    %12 = vsyncpa [#allocation3], 0
    // Predicated region
    $region2: #{dlsom_forward.1} parent=1 // pred_check
      _
    $region3: #{dlsom_forward.1} parent=1 // pred_check_branch
      %14 = sbr.rel (0) target = $region5
    $region4: #{dlsom_forward.1} parent=1 // pred_region
      _
    $region5: #{dlsom_forward.1} parent=1 // pred_fallthru
      _
    // Predicated region
    $region6: #{dlsom_forward.1} parent=1 // pred_check
      _
    $region7: #{dlsom_forward.1} parent=1 // pred_check_branch
      %16 = sbr.rel (0) target = $region9
    $region8: #{dlsom_forward.1} parent=1 // pred_region
      _
    $region9: #{dlsom_forward.1} parent=1 // pred_fallthru
      _
    // Predicated region
    $region10: #{dlsom_forward.1} parent=1 // pred_check
      _
    $region11: #{dlsom_forward.1} parent=1 // pred_check_branch
      %18 = sbr.rel (0) target = $region13
    $region12: #{dlsom_forward.1} parent=1 // pred_region
      _
    $region13: #{dlsom_forward.1} parent=1 // pred_fallthru
      _
    // Predicated region
    $region14: #{dlsom_forward.1} parent=1 // pred_check
      _
    $region15: #{dlsom_forward.1} parent=1 // pred_check_branch
      %20 = sbr.rel (0) target = $region17
    $region16: #{dlsom_forward.1} parent=1 // pred_region
      _
    $region17: #{dlsom_forward.1} parent=1 // pred_fallthru
      _
    // Predicated region
    $region18: #{dlsom_forward.1} parent=1 // pred_check
      _
    $region19: #{dlsom_forward.1} parent=1 // pred_check_branch
      %22 = sbr.rel (0) target = $region21
    $region20: #{dlsom_forward.1} parent=1 // pred_region
      _
    $region21: #{dlsom_forward.1} parent=1 // pred_fallthru
      _
    // Predicated region
    $region22: #{dlsom_forward.1} parent=1 // pred_check
      _
    $region23: #{dlsom_forward.1} parent=1 // pred_check_branch
      %24 = sbr.rel (0) target = $region25
    $region24: #{dlsom_forward.1} parent=1 // pred_region
      _
    $region25: #{dlsom_forward.1} parent=1 // pred_fallthru
      _
    // Predicated region
    $region26: #{dlsom_forward.1} parent=1 // pred_check
      _
    $region27: #{dlsom_forward.1} parent=1 // pred_check_branch
      %26 = sbr.rel (0) target = $region29
    $region28: #{dlsom_forward.1} parent=1 // pred_region
      _
    $region29: #{dlsom_forward.1} parent=1 // pred_fallthru
      _
    %v27 = vld [vmem:[%s1] sm:$0xff]
    %v28 = vld [vmem:[%s0] sm:$0xff]
    %v29 = vld [vmem:[%s0 + $0x8] sm:$0xff]
    %v30 = vld [vmem:[%s0 + $0x10] sm:$0xff]
    %v31 = vld [vmem:[%s0 + $0x18] sm:$0xff]
    %v32 = vld [vmem:[%s0 + $0x20] sm:$0xff]
    %v33 = vld [vmem:[%s0 + $0x28] sm:$0xff]
    %v34 = vld [vmem:[%s0 + $0x30] sm:$0xff]
    %v35 = vld [vmem:[%s0 + $0x38] sm:$0xff]
    %v36 = vld [vmem:[%s0 + $0x40] sm:$0xf]
    %v37 = vld [vmem:[%s0 + $0x48] sm:$0xf]
    %v38 = vld [vmem:[%s2] sm:$0xff]
    %40 = vset.pattern.permute.xlu0 0
    %41 = vperm.xlu0 %40, %v38
    %v42 = vpop.permute.xlu0 %41
    %vm44 = vcmask 293888
    %v46 = vsel %vm44, %v27, 0
    %vm48 = vcmask 1043456
    %v50 = vsel %vm48, %v36, 0
    %v53 = vsel %vm48, %v37, 0
    %55 = vmatprep.subr.mxu0 %v29
    %56 = vmatpush1.msra.mxu0 %v28
    %57 = vmatprep.subr.mxu0 %v31
    %58 = vmatpush1.msra.mxu0 %v30
    %59 = vmatprep.subr.mxu0 %v33
    %60 = vmatpush1.msra.mxu0 %v32
    %61 = vmatprep.subr.mxu0 %v35
    %62 = vmatpush1.msra.mxu0 %v34
    %63 = vmatprep.subr.mxu0 %v53
    %64 = vmatpush1.msra.mxu0 %v50
    %65 = vmatprep.subr.mxu0 0.0
    %66 = vmatpush1.msra.mxu0 0.0
    %67 = vmatprep.subr.mxu0 0.0
    %68 = vmatpush1.msra.mxu0 0.0
    %69 = vmatprep.subr.mxu0 0.0
    %70 = vmatpush1.msra.mxu0 0.0
    %71 = vmatprep.subr.mxu0 0.0
    %72 = vmatpush1.msra.mxu0 0.0
    %73 = vmatprep.subr.mxu0 0.0
    %74 = vmatpush1.msra.mxu0 0.0
    %75 = vmatprep.subr.mxu0 0.0
    %76 = vmatpush1.msra.mxu0 0.0
    %77 = vmatprep.subr.mxu0 0.0
    %78 = vmatpush1.msra.mxu0 0.0
    %79 = vmatprep.subr.mxu0 0.0
    %80 = vmatpush1.msra.mxu0 0.0
    %81 = vmatprep.subr.mxu0 0.0
    %82 = vmatpush1.msra.mxu0 0.0
    %83 = vmatprep.subr.mxu0 0.0
    %84 = vmatpush1.msra.mxu0 0.0
    %85 = vmatprep.subr.mxu0 0.0
    %86 = vmatpush1.msra.mxu0 0.0
    %87 = vmatprep.subr.mxu0 0.0
    %88 = vmatpush1.msra.mxu0 0.0
    %89 = vmatprep.subr.mxu0 0.0
    %90 = vmatpush1.msra.mxu0 0.0
    %91 = vmatprep.subr.mxu0 0.0
    %92 = vmatpush1.msra.mxu0 0.0
    %93 = vmatprep.subr.mxu0 0.0
    %94 = vmatpush1.msra.mxu0 0.0
    %95 = vmatprep.subr.mxu0 0.0
    %96 = vmatpush1.msra.mxu0 0.0
    %97 = vmatprep.subr.mxu0 0.0
    %98 = vmatpush1.msra.mxu0 0.0
    %99 = vmatprep.subr.mxu0 0.0
    %100 = vmatpush1.msra.mxu0 0.0
    %101 = vmatprep.subr.mxu0 0.0
    %102 = vmatpush1.msra.mxu0 0.0
    %103 = vmatprep.subr.mxu0 0.0
    %104 = vmatpush1.msra.mxu0 0.0
    %105 = vmatprep.subr.mxu0 0.0
    %106 = vmatpush1.msra.mxu0 0.0
    %107 = vmatprep.subr.mxu0 0.0
    %108 = vmatpush1.msra.mxu0 0.0
    %109 = vmatprep.subr.mxu0 0.0
    %110 = vmatpush1.msra.mxu0 0.0
    %111 = vmatprep.subr.mxu0 0.0
    %112 = vmatpush1.msra.mxu0 0.0
    %113 = vmatprep.subr.mxu0 0.0
    %114 = vmatpush1.msra.mxu0 0.0
    %115 = vmatprep.subr.mxu0 0.0
    %116 = vmatpush1.msra.mxu0 0.0
    %117 = vmatprep.subr.mxu0 0.0
    %118 = vmatpush1.msra.mxu0 0.0
    %119 = vmatprep.mubr.f32.mxu0 0.0
    %120 = vmatmul.mubr.f32.gmra.mrb[0].mxu0 %v46
    %v121 = vpop.f32.mrb[0].mxu0
    %v122 = vadd.f32 %v42, %v121
    %v123 = vpop.f32.mrb[0].mxu0
    %v124 = vadd.f32 %v42, %v123
    %125 = vdwg.mxu0
    %v126 = vmax.f32 %v122, 0.0
    %v127 = vmax.f32 %v124, 0.0
    %v128 = vmin.f32 %v126, %v127
    %129 = vmin.xlane.f32.xlu0 %v128
    %v130 = vpop.xlane.xlu0 %129
    %v131 = vrot.slane %v130, 4
    %v132 = vmin.f32 %v130, %v131
    %v133 = vrot.slane %v132, 2
    %v134 = vmin.f32 %v132, %v133
    %v135 = vrot.slane %v134, 1
    %v136 = vmin.f32 %v134, %v135
    %v137 = vmax.f32 %v126, %v127
    %138 = vmax.xlane.f32.xlu0 %v137
    %v139 = vpop.xlane.xlu0 %138
    %v140 = vrot.slane %v139, 4
    %v141 = vmax.f32 %v139, %v140
    %v142 = vrot.slane %v141, 2
    %v143 = vmax.f32 %v141, %v142
    %v144 = vrot.slane %v143, 1
    %v145 = vmax.f32 %v143, %v144
    %s146 = scalar_lea.vmem %s0, 80
    %v147 = vld [vmem:[%s146] sm:$0xff]
    %v148 = vld [vmem:[%s146 + $0x8] sm:$0xff]
    %v149 = vld [vmem:[%s146 + $0x10] sm:$0xff]
    %v150 = vld [vmem:[%s146 + $0x18] sm:$0xff]
    %v151 = vld [vmem:[%s146 + $0x20] sm:$0xff]
    %v152 = vld [vmem:[%s146 + $0x28] sm:$0xff]
    %v153 = vld [vmem:[%s146 + $0x30] sm:$0xff]
    %v154 = vld [vmem:[%s146 + $0x38] sm:$0xff]
    %v155 = vld [vmem:[%s146 + $0x40] sm:$0xf]
    %v156 = vld [vmem:[%s146 + $0x48] sm:$0xf]
    %v158 = vsel %vm48, %v155, 0
    %v161 = vsel %vm48, %v156, 0
    %163 = vmatprep.subr.mxu0 %v148
    %164 = vmatpush1.msra.mxu0 %v147
    %165 = vmatprep.subr.mxu0 %v150
    %166 = vmatpush1.msra.mxu0 %v149
    %167 = vmatprep.subr.mxu0 %v152
    %168 = vmatpush1.msra.mxu0 %v151
    %169 = vmatprep.subr.mxu0 %v154
    %170 = vmatpush1.msra.mxu0 %v153
    %171 = vmatprep.subr.mxu0 %v161
    %172 = vmatpush1.msra.mxu0 %v158
    %173 = vmatprep.subr.mxu0 0.0
    %174 = vmatpush1.msra.mxu0 0.0
    %175 = vmatprep.subr.mxu0 0.0
    %176 = vmatpush1.msra.mxu0 0.0
    %177 = vmatprep.subr.mxu0 0.0
    %178 = vmatpush1.msra.mxu0 0.0
    %179 = vmatprep.subr.mxu0 0.0
    %180 = vmatpush1.msra.mxu0 0.0
    %181 = vmatprep.subr.mxu0 0.0
    %182 = vmatpush1.msra.mxu0 0.0
    %183 = vmatprep.subr.mxu0 0.0
    %184 = vmatpush1.msra.mxu0 0.0
    %185 = vmatprep.subr.mxu0 0.0
    %186 = vmatpush1.msra.mxu0 0.0
    %187 = vmatprep.subr.mxu0 0.0
    %188 = vmatpush1.msra.mxu0 0.0
    %189 = vmatprep.subr.mxu0 0.0
    %190 = vmatpush1.msra.mxu0 0.0
    %191 = vmatprep.subr.mxu0 0.0
    %192 = vmatpush1.msra.mxu0 0.0
    %193 = vmatprep.subr.mxu0 0.0
    %194 = vmatpush1.msra.mxu0 0.0
    %195 = vmatprep.subr.mxu0 0.0
    %196 = vmatpush1.msra.mxu0 0.0
    %197 = vmatprep.subr.mxu0 0.0
    %198 = vmatpush1.msra.mxu0 0.0
    %199 = vmatprep.subr.mxu0 0.0
    %200 = vmatpush1.msra.mxu0 0.0
    %201 = vmatprep.subr.mxu0 0.0
    %202 = vmatpush1.msra.mxu0 0.0
    %203 = vmatprep.subr.mxu0 0.0
    %204 = vmatpush1.msra.mxu0 0.0
    %205 = vmatprep.subr.mxu0 0.0
    %206 = vmatpush1.msra.mxu0 0.0
    %207 = vmatprep.subr.mxu0 0.0
    %208 = vmatpush1.msra.mxu0 0.0
    %209 = vmatprep.subr.mxu0 0.0
    %210 = vmatpush1.msra.mxu0 0.0
    %211 = vmatprep.subr.mxu0 0.0
    %212 = vmatpush1.msra.mxu0 0.0
    %213 = vmatprep.subr.mxu0 0.0
    %214 = vmatpush1.msra.mxu0 0.0
    %215 = vmatprep.subr.mxu0 0.0
    %216 = vmatpush1.msra.mxu0 0.0
    %217 = vmatprep.subr.mxu0 0.0
    %218 = vmatpush1.msra.mxu0 0.0
    %219 = vmatprep.subr.mxu0 0.0
    %220 = vmatpush1.msra.mxu0 0.0
    %221 = vmatprep.subr.mxu0 0.0
    %222 = vmatpush1.msra.mxu0 0.0
    %223 = vmatprep.subr.mxu0 0.0
    %224 = vmatpush1.msra.mxu0 0.0
    %225 = vmatprep.subr.mxu0 0.0
    %226 = vmatpush1.msra.mxu0 0.0
    %227 = vmatprep.mubr.f32.mxu0 0.0
    %228 = vmatmul.mubr.f32.gmra.mrb[0].mxu0 %v46
    %v229 = vpop.f32.mrb[0].mxu0
    %v230 = vadd.f32 %v42, %v229
    %v231 = vpop.f32.mrb[0].mxu0
    %v232 = vadd.f32 %v42, %v231
    %233 = vdwg.mxu0
    %v234 = vmax.f32 %v230, 0.0
    %v235 = vmax.f32 %v232, 0.0
    %v236 = vmin.f32 %v234, %v235
    %237 = vmin.xlane.f32.xlu0 %v236
    %v238 = vpop.xlane.xlu0 %237
    %v239 = vrot.slane %v238, 4
    %v240 = vmin.f32 %v238, %v239
    %v241 = vrot.slane %v240, 2
    %v242 = vmin.f32 %v240, %v241
    %v243 = vrot.slane %v242, 1
    %v244 = vmin.f32 %v242, %v243
    %v245 = vmax.f32 %v234, %v235
    %246 = vmax.xlane.f32.xlu0 %v245
    %v247 = vpop.xlane.xlu0 %246
    %v248 = vrot.slane %v247, 4
    %v249 = vmax.f32 %v247, %v248
    %v250 = vrot.slane %v249, 2
    %v251 = vmax.f32 %v249, %v250
    %v252 = vrot.slane %v251, 1
    %v253 = vmax.f32 %v251, %v252
    %v254 = vmin.f32 %v136, %v244
    %v255 = vmax.f32 %v145, %v253
    %v256 = vsub.f32 %v255, %v254
    %v257 = vrcp.pop %v256
    %v260 = vrot.slane %v234, 7
    %v261 = vrot.slane %v235, 7
    %vm264 = vcmask 1040384
    %v265 = vsel %vm264, %v126, %v260
    %v266 = vsel %vm264, %v127, %v261
    %v267 = vld [vmem:[%s3] sm:$0xff]
    %v268 = vld [vmem:[%s3 + $0x8] sm:$0xff]
    %v269 = vld [vmem:[%s3 + $0x10] sm:$0xff]
    %v270 = vld [vmem:[%s3 + $0x18] sm:$0xff]
    %v271 = vld [vmem:[%s3 + $0x20] sm:$0xff]
    %v272 = vld [vmem:[%s3 + $0x28] sm:$0xff]
    %v273 = vld [vmem:[%s3 + $0x30] sm:$0xff]
    %v274 = vld [vmem:[%s3 + $0x38] sm:$0xff]
    %v275 = vld [vmem:[%s3 + $0x40] sm:$0xff]
    %v276 = vld [vmem:[%s3 + $0x48] sm:$0xff]
    %v277 = vld [vmem:[%s3 + $0x50] sm:$0xff]
    %v278 = vld [vmem:[%s3 + $0x58] sm:$0xff]
    %v279 = vld [vmem:[%s3 + $0x60] sm:$0xff]
    %v280 = vld [vmem:[%s3 + $0x68] sm:$0xff]
    %v281 = vld [vmem:[%s3 + $0x70] sm:$0xff]
    %v282 = vld [vmem:[%s3 + $0x78] sm:$0xff]
    %v283 = vld [vmem:[%s3 + $0x80] sm:$0xff]
    %v284 = vld [vmem:[%s3 + $0x88] sm:$0xff]
    %v285 = vld [vmem:[%s3 + $0x90] sm:$0xff]
    %v286 = vld [vmem:[%s3 + $0x98] sm:$0xff]
    %v287 = vld [vmem:[%s3 + $0xa0] sm:$0xff]
    %v288 = vld [vmem:[%s3 + $0xa8] sm:$0xff]
    %v289 = vld [vmem:[%s3 + $0xb0] sm:$0xff]
    %v290 = vld [vmem:[%s3 + $0xb8] sm:$0xff]
    %v291 = vld [vmem:[%s3 + $0xc0] sm:$0xff]
    %v292 = vld [vmem:[%s3 + $0xc8] sm:$0xff]
    %v293 = vld [vmem:[%s3 + $0xd0] sm:$0xff]
    %v294 = vld [vmem:[%s3 + $0xd8] sm:$0xff]
    %v295 = vld [vmem:[%s3 + $0xe0] sm:$0xff]
    %v296 = vld [vmem:[%s3 + $0xe8] sm:$0xff]
    %v297 = vld [vmem:[%s3 + $0xf0] sm:$0xff]
    %v298 = vld [vmem:[%s3 + $0xf8] sm:$0xff]
    %v301 = vrot.slane %v126, 1
    %v302 = vrot.slane %v127, 1
    %v305 = vsel %vm264, %v301, %v234
    %v306 = vsel %vm264, %v302, %v235
    %s307 = scalar_lea.vmem %s3, 256
    %v308 = vld [vmem:[%s307] sm:$0xff]
    %v309 = vld [vmem:[%s307 + $0x8] sm:$0xff]
    %v310 = vld [vmem:[%s307 + $0x10] sm:$0xff]
    %v311 = vld [vmem:[%s307 + $0x18] sm:$0xff]
    %v312 = vld [vmem:[%s307 + $0x20] sm:$0xff]
    %v313 = vld [vmem:[%s307 + $0x28] sm:$0xff]
    %v314 = vld [vmem:[%s307 + $0x30] sm:$0xff]
    %v315 = vld [vmem:[%s307 + $0x38] sm:$0xff]
    %v316 = vld [vmem:[%s307 + $0x40] sm:$0xff]
    %v317 = vld [vmem:[%s307 + $0x48] sm:$0xff]
    %v318 = vld [vmem:[%s307 + $0x50] sm:$0xff]
    %v319 = vld [vmem:[%s307 + $0x58] sm:$0xff]
    %v320 = vld [vmem:[%s307 + $0x60] sm:$0xff]
    %v321 = vld [vmem:[%s307 + $0x68] sm:$0xff]
    %v322 = vld [vmem:[%s307 + $0x70] sm:$0xff]
    %v323 = vld [vmem:[%s307 + $0x78] sm:$0xff]
    %v324 = vld [vmem:[%s307 + $0x80] sm:$0xff]
    %v325 = vld [vmem:[%s307 + $0x88] sm:$0xff]
    %v326 = vld [vmem:[%s307 + $0x90] sm:$0xff]
    %v327 = vld [vmem:[%s307 + $0x98] sm:$0xff]
    %v328 = vld [vmem:[%s307 + $0xa0] sm:$0xff]
    %v329 = vld [vmem:[%s307 + $0xa8] sm:$0xff]
    %v330 = vld [vmem:[%s307 + $0xb0] sm:$0xff]
    %v331 = vld [vmem:[%s307 + $0xb8] sm:$0xff]
    %v332 = vld [vmem:[%s307 + $0xc0] sm:$0xff]
    %v333 = vld [vmem:[%s307 + $0xc8] sm:$0xff]
    %v334 = vld [vmem:[%s307 + $0xd0] sm:$0xff]
    %v335 = vld [vmem:[%s307 + $0xd8] sm:$0xff]
    %v336 = vld [vmem:[%s307 + $0xe0] sm:$0xff]
    %v337 = vld [vmem:[%s307 + $0xe8] sm:$0xff]
    %v338 = vld [vmem:[%s307 + $0xf0] sm:$0xff]
    %v339 = vld [vmem:[%s307 + $0xf8] sm:$0xff]
    %340 = vmatprep.subr.mxu0 0.0
    %341 = vmatpush1.msra.mxu0 %v308
    %342 = vmatprep.subr.mxu0 0.0
    %343 = vmatpush1.msra.mxu0 %v309
    %344 = vmatprep.subr.mxu0 0.0
    %345 = vmatpush1.msra.mxu0 %v310
    %346 = vmatprep.subr.mxu0 0.0
    %347 = vmatpush1.msra.mxu0 %v311
    %348 = vmatprep.subr.mxu0 0.0
    %349 = vmatpush1.msra.mxu0 %v312
    %350 = vmatprep.subr.mxu0 0.0
    %351 = vmatpush1.msra.mxu0 %v313
    %352 = vmatprep.subr.mxu0 0.0
    %353 = vmatpush1.msra.mxu0 %v314
    %354 = vmatprep.subr.mxu0 0.0
    %355 = vmatpush1.msra.mxu0 %v315
    %356 = vmatprep.subr.mxu0 0.0
    %357 = vmatpush1.msra.mxu0 %v316
    %358 = vmatprep.subr.mxu0 0.0
    %359 = vmatpush1.msra.mxu0 %v317
    %360 = vmatprep.subr.mxu0 0.0
    %361 = vmatpush1.msra.mxu0 %v318
    %362 = vmatprep.subr.mxu0 0.0
    %363 = vmatpush1.msra.mxu0 %v319
    %364 = vmatprep.subr.mxu0 0.0
    %365 = vmatpush1.msra.mxu0 %v320
    %366 = vmatprep.subr.mxu0 0.0
    %367 = vmatpush1.msra.mxu0 %v321
    %368 = vmatprep.subr.mxu0 0.0
    %369 = vmatpush1.msra.mxu0 %v322
    %370 = vmatprep.subr.mxu0 0.0
    %371 = vmatpush1.msra.mxu0 %v323
    %372 = vmatprep.subr.mxu0 0.0
    %373 = vmatpush1.msra.mxu0 %v324
    %374 = vmatprep.subr.mxu0 0.0
    %375 = vmatpush1.msra.mxu0 %v325
    %376 = vmatprep.subr.mxu0 0.0
    %377 = vmatpush1.msra.mxu0 %v326
    %378 = vmatprep.subr.mxu0 0.0
    %379 = vmatpush1.msra.mxu0 %v327
    %380 = vmatprep.subr.mxu0 0.0
    %381 = vmatpush1.msra.mxu0 %v328
    %382 = vmatprep.subr.mxu0 0.0
    %383 = vmatpush1.msra.mxu0 %v329
    %384 = vmatprep.subr.mxu0 0.0
    %385 = vmatpush1.msra.mxu0 %v330
    %386 = vmatprep.subr.mxu0 0.0
    %387 = vmatpush1.msra.mxu0 %v331
    %388 = vmatprep.subr.mxu0 0.0
    %389 = vmatpush1.msra.mxu0 %v332
    %390 = vmatprep.subr.mxu0 0.0
    %391 = vmatpush1.msra.mxu0 %v333
    %392 = vmatprep.subr.mxu0 0.0
    %393 = vmatpush1.msra.mxu0 %v334
    %394 = vmatprep.subr.mxu0 0.0
    %395 = vmatpush1.msra.mxu0 %v335
    %396 = vmatprep.subr.mxu0 0.0
    %397 = vmatpush1.msra.mxu0 %v336
    %398 = vmatprep.subr.mxu0 0.0
    %399 = vmatpush1.msra.mxu0 %v337
    %400 = vmatprep.subr.mxu0 0.0
    %401 = vmatpush1.msra.mxu0 %v338
    %402 = vmatprep.subr.mxu0 0.0
    %403 = vmatpush1.msra.mxu0 %v339
    %404 = vmatprep.mubr.f32.mxu0 %v306
    %405 = vmatmul.mubr.f32.gmra.mrb[0].mxu0 %v305
    %v406 = vpop.f32.mrb[0].mxu0
    %v407 = vadd.f32 0.0, %v406
    %v408 = vpop.f32.mrb[0].mxu0
    %409 = vdwg.mxu0
    %410 = vmatprep.subr.mxu0 0.0
    %411 = vmatpush1.msra.mxu0 %v267
    %412 = vmatprep.subr.mxu0 0.0
    %413 = vmatpush1.msra.mxu0 %v268
    %414 = vmatprep.subr.mxu0 0.0
    %415 = vmatpush1.msra.mxu0 %v269
    %416 = vmatprep.subr.mxu0 0.0
    %417 = vmatpush1.msra.mxu0 %v270
    %418 = vmatprep.subr.mxu0 0.0
    %419 = vmatpush1.msra.mxu0 %v271
    %420 = vmatprep.subr.mxu0 0.0
    %421 = vmatpush1.msra.mxu0 %v272
    %422 = vmatprep.subr.mxu0 0.0
    %423 = vmatpush1.msra.mxu0 %v273
    %424 = vmatprep.subr.mxu0 0.0
    %425 = vmatpush1.msra.mxu0 %v274
    %426 = vmatprep.subr.mxu0 0.0
    %427 = vmatpush1.msra.mxu0 %v275
    %428 = vmatprep.subr.mxu0 0.0
    %429 = vmatpush1.msra.mxu0 %v276
    %430 = vmatprep.subr.mxu0 0.0
    %431 = vmatpush1.msra.mxu0 %v277
    %432 = vmatprep.subr.mxu0 0.0
    %433 = vmatpush1.msra.mxu0 %v278
    %434 = vmatprep.subr.mxu0 0.0
    %435 = vmatpush1.msra.mxu0 %v279
    %436 = vmatprep.subr.mxu0 0.0
    %437 = vmatpush1.msra.mxu0 %v280
    %438 = vmatprep.subr.mxu0 0.0
    %439 = vmatpush1.msra.mxu0 %v281
    %440 = vmatprep.subr.mxu0 0.0
    %441 = vmatpush1.msra.mxu0 %v282
    %442 = vmatprep.subr.mxu0 0.0
    %443 = vmatpush1.msra.mxu0 %v283
    %444 = vmatprep.subr.mxu0 0.0
    %445 = vmatpush1.msra.mxu0 %v284
    %446 = vmatprep.subr.mxu0 0.0
    %447 = vmatpush1.msra.mxu0 %v285
    %448 = vmatprep.subr.mxu0 0.0
    %449 = vmatpush1.msra.mxu0 %v286
    %450 = vmatprep.subr.mxu0 0.0
    %451 = vmatpush1.msra.mxu0 %v287
    %452 = vmatprep.subr.mxu0 0.0
    %453 = vmatpush1.msra.mxu0 %v288
    %454 = vmatprep.subr.mxu0 0.0
    %455 = vmatpush1.msra.mxu0 %v289
    %456 = vmatprep.subr.mxu0 0.0
    %457 = vmatpush1.msra.mxu0 %v290
    %458 = vmatprep.subr.mxu0 0.0
    %459 = vmatpush1.msra.mxu0 %v291
    %460 = vmatprep.subr.mxu0 0.0
    %461 = vmatpush1.msra.mxu0 %v292
    %462 = vmatprep.subr.mxu0 0.0
    %463 = vmatpush1.msra.mxu0 %v293
    %464 = vmatprep.subr.mxu0 0.0
    %465 = vmatpush1.msra.mxu0 %v294
    %466 = vmatprep.subr.mxu0 0.0
    %467 = vmatpush1.msra.mxu0 %v295
    %468 = vmatprep.subr.mxu0 0.0
    %469 = vmatpush1.msra.mxu0 %v296
    %470 = vmatprep.subr.mxu0 0.0
    %471 = vmatpush1.msra.mxu0 %v297
    %472 = vmatprep.subr.mxu0 0.0
    %473 = vmatpush1.msra.mxu0 %v298
    %474 = vmatprep.mubr.f32.mxu0 %v266
    %475 = vmatmul.mubr.f32.gmra.mrb[0].mxu0 %v265
    %v476 = vpop.f32.mrb[0].mxu0
    %v477 = vadd.f32 %v407, %v476
    %v478 = vpop.f32.mrb[0].mxu0
    %479 = vdwg.mxu0
    %v480 = vrot.slane %v126, 2
    %v481 = vrot.slane %v127, 2
    %v484 = vrot.slane %v234, 1
    %v485 = vrot.slane %v235, 1
    %v488 = vsel %vm264, %v480, %v484
    %v489 = vsel %vm264, %v481, %v485
    %s490 = scalar_lea.vmem %s3, 512
    %v491 = vld [vmem:[%s490] sm:$0xff]
    %v492 = vld [vmem:[%s490 + $0x8] sm:$0xff]
    %v493 = vld [vmem:[%s490 + $0x10] sm:$0xff]
    %v494 = vld [vmem:[%s490 + $0x18] sm:$0xff]
    %v495 = vld [vmem:[%s490 + $0x20] sm:$0xff]
    %v496 = vld [vmem:[%s490 + $0x28] sm:$0xff]
    %v497 = vld [vmem:[%s490 + $0x30] sm:$0xff]
    %v498 = vld [vmem:[%s490 + $0x38] sm:$0xff]
    %v499 = vld [vmem:[%s490 + $0x40] sm:$0xff]
    %v500 = vld [vmem:[%s490 + $0x48] sm:$0xff]
    %v501 = vld [vmem:[%s490 + $0x50] sm:$0xff]
    %v502 = vld [vmem:[%s490 + $0x58] sm:$0xff]
    %v503 = vld [vmem:[%s490 + $0x60] sm:$0xff]
    %v504 = vld [vmem:[%s490 + $0x68] sm:$0xff]
    %v505 = vld [vmem:[%s490 + $0x70] sm:$0xff]
    %v506 = vld [vmem:[%s490 + $0x78] sm:$0xff]
    %v507 = vld [vmem:[%s490 + $0x80] sm:$0xff]
    %v508 = vld [vmem:[%s490 + $0x88] sm:$0xff]
    %v509 = vld [vmem:[%s490 + $0x90] sm:$0xff]
    %v510 = vld [vmem:[%s490 + $0x98] sm:$0xff]
    %v511 = vld [vmem:[%s490 + $0xa0] sm:$0xff]
    %v512 = vld [vmem:[%s490 + $0xa8] sm:$0xff]
    %v513 = vld [vmem:[%s490 + $0xb0] sm:$0xff]
    %v514 = vld [vmem:[%s490 + $0xb8] sm:$0xff]
    %v515 = vld [vmem:[%s490 + $0xc0] sm:$0xff]
    %v516 = vld [vmem:[%s490 + $0xc8] sm:$0xff]
    %v517 = vld [vmem:[%s490 + $0xd0] sm:$0xff]
    %v518 = vld [vmem:[%s490 + $0xd8] sm:$0xff]
    %v519 = vld [vmem:[%s490 + $0xe0] sm:$0xff]
    %v520 = vld [vmem:[%s490 + $0xe8] sm:$0xff]
    %v521 = vld [vmem:[%s490 + $0xf0] sm:$0xff]
    %v522 = vld [vmem:[%s490 + $0xf8] sm:$0xff]
    %523 = vmatprep.subr.mxu0 0.0
    %524 = vmatpush1.msra.mxu0 %v491
    %525 = vmatprep.subr.mxu0 0.0
    %526 = vmatpush1.msra.mxu0 %v492
    %527 = vmatprep.subr.mxu0 0.0
    %528 = vmatpush1.msra.mxu0 %v493
    %529 = vmatprep.subr.mxu0 0.0
    %530 = vmatpush1.msra.mxu0 %v494
    %531 = vmatprep.subr.mxu0 0.0
    %532 = vmatpush1.msra.mxu0 %v495
    %533 = vmatprep.subr.mxu0 0.0
    %534 = vmatpush1.msra.mxu0 %v496
    %535 = vmatprep.subr.mxu0 0.0
    %536 = vmatpush1.msra.mxu0 %v497
    %537 = vmatprep.subr.mxu0 0.0
    %538 = vmatpush1.msra.mxu0 %v498
    %539 = vmatprep.subr.mxu0 0.0
    %540 = vmatpush1.msra.mxu0 %v499
    %541 = vmatprep.subr.mxu0 0.0
    %542 = vmatpush1.msra.mxu0 %v500
    %543 = vmatprep.subr.mxu0 0.0
    %544 = vmatpush1.msra.mxu0 %v501
    %545 = vmatprep.subr.mxu0 0.0
    %546 = vmatpush1.msra.mxu0 %v502
    %547 = vmatprep.subr.mxu0 0.0
    %548 = vmatpush1.msra.mxu0 %v503
    %549 = vmatprep.subr.mxu0 0.0
    %550 = vmatpush1.msra.mxu0 %v504
    %551 = vmatprep.subr.mxu0 0.0
    %552 = vmatpush1.msra.mxu0 %v505
    %553 = vmatprep.subr.mxu0 0.0
    %554 = vmatpush1.msra.mxu0 %v506
    %555 = vmatprep.subr.mxu0 0.0
    %556 = vmatpush1.msra.mxu0 %v507
    %557 = vmatprep.subr.mxu0 0.0
    %558 = vmatpush1.msra.mxu0 %v508
    %559 = vmatprep.subr.mxu0 0.0
    %560 = vmatpush1.msra.mxu0 %v509
    %561 = vmatprep.subr.mxu0 0.0
    %562 = vmatpush1.msra.mxu0 %v510
    %563 = vmatprep.subr.mxu0 0.0
    %564 = vmatpush1.msra.mxu0 %v511
    %565 = vmatprep.subr.mxu0 0.0
    %566 = vmatpush1.msra.mxu0 %v512
    %567 = vmatprep.subr.mxu0 0.0
    %568 = vmatpush1.msra.mxu0 %v513
    %569 = vmatprep.subr.mxu0 0.0
    %570 = vmatpush1.msra.mxu0 %v514
    %571 = vmatprep.subr.mxu0 0.0
    %572 = vmatpush1.msra.mxu0 %v515
    %573 = vmatprep.subr.mxu0 0.0
    %574 = vmatpush1.msra.mxu0 %v516
    %575 = vmatprep.subr.mxu0 0.0
    %576 = vmatpush1.msra.mxu0 %v517
    %577 = vmatprep.subr.mxu0 0.0
    %578 = vmatpush1.msra.mxu0 %v518
    %579 = vmatprep.subr.mxu0 0.0
    %580 = vmatpush1.msra.mxu0 %v519
    %581 = vmatprep.subr.mxu0 0.0
    %582 = vmatpush1.msra.mxu0 %v520
    %583 = vmatprep.subr.mxu0 0.0
    %584 = vmatpush1.msra.mxu0 %v521
    %585 = vmatprep.subr.mxu0 0.0
    %586 = vmatpush1.msra.mxu0 %v522
    %587 = vmatprep.mubr.f32.mxu0 %v489
    %588 = vmatmul.mubr.f32.gmra.mrb[0].mxu0 %v488
    %v589 = vpop.f32.mrb[0].mxu0
    %v590 = vadd.f32 0.0, %v589
    %v591 = vpop.f32.mrb[0].mxu0
    %592 = vdwg.mxu0
    %v593 = vadd.f32 %v477, %v590
    %v594 = vrot.slane %v126, 3
    %v595 = vrot.slane %v127, 3
    %v598 = vrot.slane %v234, 2
    %v599 = vrot.slane %v235, 2
    %v602 = vsel %vm264, %v594, %v598
    %v603 = vsel %vm264, %v595, %v599
    %s604 = scalar_lea.vmem %s3, 768
    %v605 = vld [vmem:[%s604] sm:$0xff]
    %v606 = vld [vmem:[%s604 + $0x8] sm:$0xff]
    %v607 = vld [vmem:[%s604 + $0x10] sm:$0xff]
    %v608 = vld [vmem:[%s604 + $0x18] sm:$0xff]
    %v609 = vld [vmem:[%s604 + $0x20] sm:$0xff]
    %v610 = vld [vmem:[%s604 + $0x28] sm:$0xff]
    %v611 = vld [vmem:[%s604 + $0x30] sm:$0xff]
    %v612 = vld [vmem:[%s604 + $0x38] sm:$0xff]
    %v613 = vld [vmem:[%s604 + $0x40] sm:$0xff]
    %v614 = vld [vmem:[%s604 + $0x48] sm:$0xff]
    %v615 = vld [vmem:[%s604 + $0x50] sm:$0xff]
    %v616 = vld [vmem:[%s604 + $0x58] sm:$0xff]
    %v617 = vld [vmem:[%s604 + $0x60] sm:$0xff]
    %v618 = vld [vmem:[%s604 + $0x68] sm:$0xff]
    %v619 = vld [vmem:[%s604 + $0x70] sm:$0xff]
    %v620 = vld [vmem:[%s604 + $0x78] sm:$0xff]
    %v621 = vld [vmem:[%s604 + $0x80] sm:$0xff]
    %v622 = vld [vmem:[%s604 + $0x88] sm:$0xff]
    %v623 = vld [vmem:[%s604 + $0x90] sm:$0xff]
    %v624 = vld [vmem:[%s604 + $0x98] sm:$0xff]
    %v625 = vld [vmem:[%s604 + $0xa0] sm:$0xff]
    %v626 = vld [vmem:[%s604 + $0xa8] sm:$0xff]
    %v627 = vld [vmem:[%s604 + $0xb0] sm:$0xff]
    %v628 = vld [vmem:[%s604 + $0xb8] sm:$0xff]
    %v629 = vld [vmem:[%s604 + $0xc0] sm:$0xff]
    %v630 = vld [vmem:[%s604 + $0xc8] sm:$0xff]
    %v631 = vld [vmem:[%s604 + $0xd0] sm:$0xff]
    %v632 = vld [vmem:[%s604 + $0xd8] sm:$0xff]
    %v633 = vld [vmem:[%s604 + $0xe0] sm:$0xff]
    %v634 = vld [vmem:[%s604 + $0xe8] sm:$0xff]
    %v635 = vld [vmem:[%s604 + $0xf0] sm:$0xff]
    %v636 = vld [vmem:[%s604 + $0xf8] sm:$0xff]
    %637 = vmatprep.subr.mxu0 0.0
    %638 = vmatpush1.msra.mxu0 %v605
    %639 = vmatprep.subr.mxu0 0.0
    %640 = vmatpush1.msra.mxu0 %v606
    %641 = vmatprep.subr.mxu0 0.0
    %642 = vmatpush1.msra.mxu0 %v607
    %643 = vmatprep.subr.mxu0 0.0
    %644 = vmatpush1.msra.mxu0 %v608
    %645 = vmatprep.subr.mxu0 0.0
    %646 = vmatpush1.msra.mxu0 %v609
    %647 = vmatprep.subr.mxu0 0.0
    %648 = vmatpush1.msra.mxu0 %v610
    %649 = vmatprep.subr.mxu0 0.0
    %650 = vmatpush1.msra.mxu0 %v611
    %651 = vmatprep.subr.mxu0 0.0
    %652 = vmatpush1.msra.mxu0 %v612
    %653 = vmatprep.subr.mxu0 0.0
    %654 = vmatpush1.msra.mxu0 %v613
    %655 = vmatprep.subr.mxu0 0.0
    %656 = vmatpush1.msra.mxu0 %v614
    %657 = vmatprep.subr.mxu0 0.0
    %658 = vmatpush1.msra.mxu0 %v615
    %659 = vmatprep.subr.mxu0 0.0
    %660 = vmatpush1.msra.mxu0 %v616
    %661 = vmatprep.subr.mxu0 0.0
    %662 = vmatpush1.msra.mxu0 %v617
    %663 = vmatprep.subr.mxu0 0.0
    %664 = vmatpush1.msra.mxu0 %v618
    %665 = vmatprep.subr.mxu0 0.0
    %666 = vmatpush1.msra.mxu0 %v619
    %667 = vmatprep.subr.mxu0 0.0
    %668 = vmatpush1.msra.mxu0 %v620
    %669 = vmatprep.subr.mxu0 0.0
    %670 = vmatpush1.msra.mxu0 %v621
    %671 = vmatprep.subr.mxu0 0.0
    %672 = vmatpush1.msra.mxu0 %v622
    %673 = vmatprep.subr.mxu0 0.0
    %674 = vmatpush1.msra.mxu0 %v623
    %675 = vmatprep.subr.mxu0 0.0
    %676 = vmatpush1.msra.mxu0 %v624
    %677 = vmatprep.subr.mxu0 0.0
    %678 = vmatpush1.msra.mxu0 %v625
    %679 = vmatprep.subr.mxu0 0.0
    %680 = vmatpush1.msra.mxu0 %v626
    %681 = vmatprep.subr.mxu0 0.0
    %682 = vmatpush1.msra.mxu0 %v627
    %683 = vmatprep.subr.mxu0 0.0
    %684 = vmatpush1.msra.mxu0 %v628
    %685 = vmatprep.subr.mxu0 0.0
    %686 = vmatpush1.msra.mxu0 %v629
    %687 = vmatprep.subr.mxu0 0.0
    %688 = vmatpush1.msra.mxu0 %v630
    %689 = vmatprep.subr.mxu0 0.0
    %690 = vmatpush1.msra.mxu0 %v631
    %691 = vmatprep.subr.mxu0 0.0
    %692 = vmatpush1.msra.mxu0 %v632
    %693 = vmatprep.subr.mxu0 0.0
    %694 = vmatpush1.msra.mxu0 %v633
    %695 = vmatprep.subr.mxu0 0.0
    %696 = vmatpush1.msra.mxu0 %v634
    %697 = vmatprep.subr.mxu0 0.0
    %698 = vmatpush1.msra.mxu0 %v635
    %699 = vmatprep.subr.mxu0 0.0
    %700 = vmatpush1.msra.mxu0 %v636
    %701 = vmatprep.mubr.f32.mxu0 %v603
    %702 = vmatmul.mubr.f32.gmra.mrb[0].mxu0 %v602
    %v703 = vpop.f32.mrb[0].mxu0
    %v704 = vadd.f32 0.0, %v703
    %v705 = vpop.f32.mrb[0].mxu0
    %706 = vdwg.mxu0
    %v707 = vadd.f32 %v593, %v704
    %v708 = vrot.slane %v126, 4
    %v709 = vrot.slane %v127, 4
    %v712 = vrot.slane %v234, 3
    %v713 = vrot.slane %v235, 3
    %v716 = vsel %vm264, %v708, %v712
    %v717 = vsel %vm264, %v709, %v713
    %s718 = scalar_lea.vmem %s3, 1024
    %v719 = vld [vmem:[%s718] sm:$0xff]
    %v720 = vld [vmem:[%s718 + $0x8] sm:$0xff]
    %v721 = vld [vmem:[%s718 + $0x10] sm:$0xff]
    %v722 = vld [vmem:[%s718 + $0x18] sm:$0xff]
    %v723 = vld [vmem:[%s718 + $0x20] sm:$0xff]
    %v724 = vld [vmem:[%s718 + $0x28] sm:$0xff]
    %v725 = vld [vmem:[%s718 + $0x30] sm:$0xff]
    %v726 = vld [vmem:[%s718 + $0x38] sm:$0xff]
    %v727 = vld [vmem:[%s718 + $0x40] sm:$0xff]
    %v728 = vld [vmem:[%s718 + $0x48] sm:$0xff]
    %v729 = vld [vmem:[%s718 + $0x50] sm:$0xff]
    %v730 = vld [vmem:[%s718 + $0x58] sm:$0xff]
    %v731 = vld [vmem:[%s718 + $0x60] sm:$0xff]
    %v732 = vld [vmem:[%s718 + $0x68] sm:$0xff]
    %v733 = vld [vmem:[%s718 + $0x70] sm:$0xff]
    %v734 = vld [vmem:[%s718 + $0x78] sm:$0xff]
    %v735 = vld [vmem:[%s718 + $0x80] sm:$0xff]
    %v736 = vld [vmem:[%s718 + $0x88] sm:$0xff]
    %v737 = vld [vmem:[%s718 + $0x90] sm:$0xff]
    %v738 = vld [vmem:[%s718 + $0x98] sm:$0xff]
    %v739 = vld [vmem:[%s718 + $0xa0] sm:$0xff]
    %v740 = vld [vmem:[%s718 + $0xa8] sm:$0xff]
    %v741 = vld [vmem:[%s718 + $0xb0] sm:$0xff]
    %v742 = vld [vmem:[%s718 + $0xb8] sm:$0xff]
    %v743 = vld [vmem:[%s718 + $0xc0] sm:$0xff]
    %v744 = vld [vmem:[%s718 + $0xc8] sm:$0xff]
    %v745 = vld [vmem:[%s718 + $0xd0] sm:$0xff]
    %v746 = vld [vmem:[%s718 + $0xd8] sm:$0xff]
    %v747 = vld [vmem:[%s718 + $0xe0] sm:$0xff]
    %v748 = vld [vmem:[%s718 + $0xe8] sm:$0xff]
    %v749 = vld [vmem:[%s718 + $0xf0] sm:$0xff]
    %v750 = vld [vmem:[%s718 + $0xf8] sm:$0xff]
    %751 = vmatprep.subr.mxu0 0.0
    %752 = vmatpush1.msra.mxu0 %v719
    %753 = vmatprep.subr.mxu0 0.0
    %754 = vmatpush1.msra.mxu0 %v720
    %755 = vmatprep.subr.mxu0 0.0
    %756 = vmatpush1.msra.mxu0 %v721
    %757 = vmatprep.subr.mxu0 0.0
    %758 = vmatpush1.msra.mxu0 %v722
    %759 = vmatprep.subr.mxu0 0.0
    %760 = vmatpush1.msra.mxu0 %v723
    %761 = vmatprep.subr.mxu0 0.0
    %762 = vmatpush1.msra.mxu0 %v724
    %763 = vmatprep.subr.mxu0 0.0
    %764 = vmatpush1.msra.mxu0 %v725
    %765 = vmatprep.subr.mxu0 0.0
    %766 = vmatpush1.msra.mxu0 %v726
    %767 = vmatprep.subr.mxu0 0.0
    %768 = vmatpush1.msra.mxu0 %v727
    %769 = vmatprep.subr.mxu0 0.0
    %770 = vmatpush1.msra.mxu0 %v728
    %771 = vmatprep.subr.mxu0 0.0
    %772 = vmatpush1.msra.mxu0 %v729
    %773 = vmatprep.subr.mxu0 0.0
    %774 = vmatpush1.msra.mxu0 %v730
    %775 = vmatprep.subr.mxu0 0.0
    %776 = vmatpush1.msra.mxu0 %v731
    %777 = vmatprep.subr.mxu0 0.0
    %778 = vmatpush1.msra.mxu0 %v732
    %779 = vmatprep.subr.mxu0 0.0
    %780 = vmatpush1.msra.mxu0 %v733
    %781 = vmatprep.subr.mxu0 0.0
    %782 = vmatpush1.msra.mxu0 %v734
    %783 = vmatprep.subr.mxu0 0.0
    %784 = vmatpush1.msra.mxu0 %v735
    %785 = vmatprep.subr.mxu0 0.0
    %786 = vmatpush1.msra.mxu0 %v736
    %787 = vmatprep.subr.mxu0 0.0
    %788 = vmatpush1.msra.mxu0 %v737
    %789 = vmatprep.subr.mxu0 0.0
    %790 = vmatpush1.msra.mxu0 %v738
    %791 = vmatprep.subr.mxu0 0.0
    %792 = vmatpush1.msra.mxu0 %v739
    %793 = vmatprep.subr.mxu0 0.0
    %794 = vmatpush1.msra.mxu0 %v740
    %795 = vmatprep.subr.mxu0 0.0
    %796 = vmatpush1.msra.mxu0 %v741
    %797 = vmatprep.subr.mxu0 0.0
    %798 = vmatpush1.msra.mxu0 %v742
    %799 = vmatprep.subr.mxu0 0.0
    %800 = vmatpush1.msra.mxu0 %v743
    %801 = vmatprep.subr.mxu0 0.0
    %802 = vmatpush1.msra.mxu0 %v744
    %803 = vmatprep.subr.mxu0 0.0
    %804 = vmatpush1.msra.mxu0 %v745
    %805 = vmatprep.subr.mxu0 0.0
    %806 = vmatpush1.msra.mxu0 %v746
    %807 = vmatprep.subr.mxu0 0.0
    %808 = vmatpush1.msra.mxu0 %v747
    %809 = vmatprep.subr.mxu0 0.0
    %810 = vmatpush1.msra.mxu0 %v748
    %811 = vmatprep.subr.mxu0 0.0
    %812 = vmatpush1.msra.mxu0 %v749
    %813 = vmatprep.subr.mxu0 0.0
    %814 = vmatpush1.msra.mxu0 %v750
    %815 = vmatprep.mubr.f32.mxu0 %v717
    %816 = vmatmul.mubr.f32.gmra.mrb[0].mxu0 %v716
    %v817 = vpop.f32.mrb[0].mxu0
    %v818 = vadd.f32 0.0, %v817
    %v819 = vpop.f32.mrb[0].mxu0
    %820 = vdwg.mxu0
    %v821 = vadd.f32 %v707, %v818
    %v822 = vrot.slane %v126, 5
    %v823 = vrot.slane %v127, 5
    %v826 = vrot.slane %v234, 4
    %v827 = vrot.slane %v235, 4
    %v830 = vsel %vm264, %v822, %v826
    %v831 = vsel %vm264, %v823, %v827
    %s832 = scalar_lea.vmem %s3, 1280
    %v833 = vld [vmem:[%s832] sm:$0xff]
    %v834 = vld [vmem:[%s832 + $0x8] sm:$0xff]
    %v835 = vld [vmem:[%s832 + $0x10] sm:$0xff]
    %v836 = vld [vmem:[%s832 + $0x18] sm:$0xff]
    %v837 = vld [vmem:[%s832 + $0x20] sm:$0xff]
    %v838 = vld [vmem:[%s832 + $0x28] sm:$0xff]
    %v839 = vld [vmem:[%s832 + $0x30] sm:$0xff]
    %v840 = vld [vmem:[%s832 + $0x38] sm:$0xff]
    %v841 = vld [vmem:[%s832 + $0x40] sm:$0xff]
    %v842 = vld [vmem:[%s832 + $0x48] sm:$0xff]
    %v843 = vld [vmem:[%s832 + $0x50] sm:$0xff]
    %v844 = vld [vmem:[%s832 + $0x58] sm:$0xff]
    %v845 = vld [vmem:[%s832 + $0x60] sm:$0xff]
    %v846 = vld [vmem:[%s832 + $0x68] sm:$0xff]
    %v847 = vld [vmem:[%s832 + $0x70] sm:$0xff]
    %v848 = vld [vmem:[%s832 + $0x78] sm:$0xff]
    %v849 = vld [vmem:[%s832 + $0x80] sm:$0xff]
    %v850 = vld [vmem:[%s832 + $0x88] sm:$0xff]
    %v851 = vld [vmem:[%s832 + $0x90] sm:$0xff]
    %v852 = vld [vmem:[%s832 + $0x98] sm:$0xff]
    %v853 = vld [vmem:[%s832 + $0xa0] sm:$0xff]
    %v854 = vld [vmem:[%s832 + $0xa8] sm:$0xff]
    %v855 = vld [vmem:[%s832 + $0xb0] sm:$0xff]
    %v856 = vld [vmem:[%s832 + $0xb8] sm:$0xff]
    %v857 = vld [vmem:[%s832 + $0xc0] sm:$0xff]
    %v858 = vld [vmem:[%s832 + $0xc8] sm:$0xff]
    %v859 = vld [vmem:[%s832 + $0xd0] sm:$0xff]
    %v860 = vld [vmem:[%s832 + $0xd8] sm:$0xff]
    %v861 = vld [vmem:[%s832 + $0xe0] sm:$0xff]
    %v862 = vld [vmem:[%s832 + $0xe8] sm:$0xff]
    %v863 = vld [vmem:[%s832 + $0xf0] sm:$0xff]
    %v864 = vld [vmem:[%s832 + $0xf8] sm:$0xff]
    %865 = vmatprep.subr.mxu0 0.0
    %866 = vmatpush1.msra.mxu0 %v833
    %867 = vmatprep.subr.mxu0 0.0
    %868 = vmatpush1.msra.mxu0 %v834
    %869 = vmatprep.subr.mxu0 0.0
    %870 = vmatpush1.msra.mxu0 %v835
    %871 = vmatprep.subr.mxu0 0.0
    %872 = vmatpush1.msra.mxu0 %v836
    %873 = vmatprep.subr.mxu0 0.0
    %874 = vmatpush1.msra.mxu0 %v837
    %875 = vmatprep.subr.mxu0 0.0
    %876 = vmatpush1.msra.mxu0 %v838
    %877 = vmatprep.subr.mxu0 0.0
    %878 = vmatpush1.msra.mxu0 %v839
    %879 = vmatprep.subr.mxu0 0.0
    %880 = vmatpush1.msra.mxu0 %v840
    %881 = vmatprep.subr.mxu0 0.0
    %882 = vmatpush1.msra.mxu0 %v841
    %883 = vmatprep.subr.mxu0 0.0
    %884 = vmatpush1.msra.mxu0 %v842
    %885 = vmatprep.subr.mxu0 0.0
    %886 = vmatpush1.msra.mxu0 %v843
    %887 = vmatprep.subr.mxu0 0.0
    %888 = vmatpush1.msra.mxu0 %v844
    %889 = vmatprep.subr.mxu0 0.0
    %890 = vmatpush1.msra.mxu0 %v845
    %891 = vmatprep.subr.mxu0 0.0
    %892 = vmatpush1.msra.mxu0 %v846
    %893 = vmatprep.subr.mxu0 0.0
    %894 = vmatpush1.msra.mxu0 %v847
    %895 = vmatprep.subr.mxu0 0.0
    %896 = vmatpush1.msra.mxu0 %v848
    %897 = vmatprep.subr.mxu0 0.0
    %898 = vmatpush1.msra.mxu0 %v849
    %899 = vmatprep.subr.mxu0 0.0
    %900 = vmatpush1.msra.mxu0 %v850
    %901 = vmatprep.subr.mxu0 0.0
    %902 = vmatpush1.msra.mxu0 %v851
    %903 = vmatprep.subr.mxu0 0.0
    %904 = vmatpush1.msra.mxu0 %v852
    %905 = vmatprep.subr.mxu0 0.0
    %906 = vmatpush1.msra.mxu0 %v853
    %907 = vmatprep.subr.mxu0 0.0
    %908 = vmatpush1.msra.mxu0 %v854
    %909 = vmatprep.subr.mxu0 0.0
    %910 = vmatpush1.msra.mxu0 %v855
    %911 = vmatprep.subr.mxu0 0.0
    %912 = vmatpush1.msra.mxu0 %v856
    %913 = vmatprep.subr.mxu0 0.0
    %914 = vmatpush1.msra.mxu0 %v857
    %915 = vmatprep.subr.mxu0 0.0
    %916 = vmatpush1.msra.mxu0 %v858
    %917 = vmatprep.subr.mxu0 0.0
    %918 = vmatpush1.msra.mxu0 %v859
    %919 = vmatprep.subr.mxu0 0.0
    %920 = vmatpush1.msra.mxu0 %v860
    %921 = vmatprep.subr.mxu0 0.0
    %922 = vmatpush1.msra.mxu0 %v861
    %923 = vmatprep.subr.mxu0 0.0
    %924 = vmatpush1.msra.mxu0 %v862
    %925 = vmatprep.subr.mxu0 0.0
    %926 = vmatpush1.msra.mxu0 %v863
    %927 = vmatprep.subr.mxu0 0.0
    %928 = vmatpush1.msra.mxu0 %v864
    %929 = vmatprep.mubr.f32.mxu0 %v831
    %930 = vmatmul.mubr.f32.gmra.mrb[0].mxu0 %v830
    %v931 = vpop.f32.mrb[0].mxu0
    %v932 = vadd.f32 0.0, %v931
    %v933 = vpop.f32.mrb[0].mxu0
    %934 = vdwg.mxu0
    %v935 = vadd.f32 %v821, %v932
    %v936 = vrot.slane %v126, 6
    %v937 = vrot.slane %v127, 6
    %v940 = vrot.slane %v234, 5
    %v941 = vrot.slane %v235, 5
    %v944 = vsel %vm264, %v936, %v940
    %v945 = vsel %vm264, %v937, %v941
    %s946 = scalar_lea.vmem %s3, 1536
    %v947 = vld [vmem:[%s946] sm:$0xff]
    %v948 = vld [vmem:[%s946 + $0x8] sm:$0xff]
    %v949 = vld [vmem:[%s946 + $0x10] sm:$0xff]
    %v950 = vld [vmem:[%s946 + $0x18] sm:$0xff]
    %v951 = vld [vmem:[%s946 + $0x20] sm:$0xff]
    %v952 = vld [vmem:[%s946 + $0x28] sm:$0xff]
    %v953 = vld [vmem:[%s946 + $0x30] sm:$0xff]
    %v954 = vld [vmem:[%s946 + $0x38] sm:$0xff]
    %v955 = vld [vmem:[%s946 + $0x40] sm:$0xff]
    %v956 = vld [vmem:[%s946 + $0x48] sm:$0xff]
    %v957 = vld [vmem:[%s946 + $0x50] sm:$0xff]
    %v958 = vld [vmem:[%s946 + $0x58] sm:$0xff]
    %v959 = vld [vmem:[%s946 + $0x60] sm:$0xff]
    %v960 = vld [vmem:[%s946 + $0x68] sm:$0xff]
    %v961 = vld [vmem:[%s946 + $0x70] sm:$0xff]
    %v962 = vld [vmem:[%s946 + $0x78] sm:$0xff]
    %v963 = vld [vmem:[%s946 + $0x80] sm:$0xff]
    %v964 = vld [vmem:[%s946 + $0x88] sm:$0xff]
    %v965 = vld [vmem:[%s946 + $0x90] sm:$0xff]
    %v966 = vld [vmem:[%s946 + $0x98] sm:$0xff]
    %v967 = vld [vmem:[%s946 + $0xa0] sm:$0xff]
    %v968 = vld [vmem:[%s946 + $0xa8] sm:$0xff]
    %v969 = vld [vmem:[%s946 + $0xb0] sm:$0xff]
    %v970 = vld [vmem:[%s946 + $0xb8] sm:$0xff]
    %v971 = vld [vmem:[%s946 + $0xc0] sm:$0xff]
    %v972 = vld [vmem:[%s946 + $0xc8] sm:$0xff]
    %v973 = vld [vmem:[%s946 + $0xd0] sm:$0xff]
    %v974 = vld [vmem:[%s946 + $0xd8] sm:$0xff]
    %v975 = vld [vmem:[%s946 + $0xe0] sm:$0xff]
    %v976 = vld [vmem:[%s946 + $0xe8] sm:$0xff]
    %v977 = vld [vmem:[%s946 + $0xf0] sm:$0xff]
    %v978 = vld [vmem:[%s946 + $0xf8] sm:$0xff]
    %979 = vmatprep.subr.mxu0 0.0
    %980 = vmatpush1.msra.mxu0 %v947
    %981 = vmatprep.subr.mxu0 0.0
    %982 = vmatpush1.msra.mxu0 %v948
    %983 = vmatprep.subr.mxu0 0.0
    %984 = vmatpush1.msra.mxu0 %v949
    %985 = vmatprep.subr.mxu0 0.0
    %986 = vmatpush1.msra.mxu0 %v950
    %987 = vmatprep.subr.mxu0 0.0
    %988 = vmatpush1.msra.mxu0 %v951
    %989 = vmatprep.subr.mxu0 0.0
    %990 = vmatpush1.msra.mxu0 %v952
    %991 = vmatprep.subr.mxu0 0.0
    %992 = vmatpush1.msra.mxu0 %v953
    %993 = vmatprep.subr.mxu0 0.0
    %994 = vmatpush1.msra.mxu0 %v954
    %995 = vmatprep.subr.mxu0 0.0
    %996 = vmatpush1.msra.mxu0 %v955
    %997 = vmatprep.subr.mxu0 0.0
    %998 = vmatpush1.msra.mxu0 %v956
    %999 = vmatprep.subr.mxu0 0.0
    %1000 = vmatpush1.msra.mxu0 %v957
    %1001 = vmatprep.subr.mxu0 0.0
    %1002 = vmatpush1.msra.mxu0 %v958
    %1003 = vmatprep.subr.mxu0 0.0
    %1004 = vmatpush1.msra.mxu0 %v959
    %1005 = vmatprep.subr.mxu0 0.0
    %1006 = vmatpush1.msra.mxu0 %v960
    %1007 = vmatprep.subr.mxu0 0.0
    %1008 = vmatpush1.msra.mxu0 %v961
    %1009 = vmatprep.subr.mxu0 0.0
    %1010 = vmatpush1.msra.mxu0 %v962
    %1011 = vmatprep.subr.mxu0 0.0
    %1012 = vmatpush1.msra.mxu0 %v963
    %1013 = vmatprep.subr.mxu0 0.0
    %1014 = vmatpush1.msra.mxu0 %v964
    %1015 = vmatprep.subr.mxu0 0.0
    %1016 = vmatpush1.msra.mxu0 %v965
    %1017 = vmatprep.subr.mxu0 0.0
    %1018 = vmatpush1.msra.mxu0 %v966
    %1019 = vmatprep.subr.mxu0 0.0
    %1020 = vmatpush1.msra.mxu0 %v967
    %1021 = vmatprep.subr.mxu0 0.0
    %1022 = vmatpush1.msra.mxu0 %v968
    %1023 = vmatprep.subr.mxu0 0.0
    %1024 = vmatpush1.msra.mxu0 %v969
    %1025 = vmatprep.subr.mxu0 0.0
    %1026 = vmatpush1.msra.mxu0 %v970
    %1027 = vmatprep.subr.mxu0 0.0
    %1028 = vmatpush1.msra.mxu0 %v971
    %1029 = vmatprep.subr.mxu0 0.0
    %1030 = vmatpush1.msra.mxu0 %v972
    %1031 = vmatprep.subr.mxu0 0.0
    %1032 = vmatpush1.msra.mxu0 %v973
    %1033 = vmatprep.subr.mxu0 0.0
    %1034 = vmatpush1.msra.mxu0 %v974
    %1035 = vmatprep.subr.mxu0 0.0
    %1036 = vmatpush1.msra.mxu0 %v975
    %1037 = vmatprep.subr.mxu0 0.0
    %1038 = vmatpush1.msra.mxu0 %v976
    %1039 = vmatprep.subr.mxu0 0.0
    %1040 = vmatpush1.msra.mxu0 %v977
    %1041 = vmatprep.subr.mxu0 0.0
    %1042 = vmatpush1.msra.mxu0 %v978
    %1043 = vmatprep.mubr.f32.mxu0 %v945
    %1044 = vmatmul.mubr.f32.gmra.mrb[0].mxu0 %v944
    %v1045 = vpop.f32.mrb[0].mxu0
    %v1046 = vadd.f32 0.0, %v1045
    %v1047 = vpop.f32.mrb[0].mxu0
    %1048 = vdwg.mxu0
    %v1049 = vadd.f32 %v935, %v1046
    %v1050 = vrot.slane %v126, 7
    %v1051 = vrot.slane %v127, 7
    %v1054 = vrot.slane %v234, 6
    %v1055 = vrot.slane %v235, 6
    %v1058 = vsel %vm264, %v1050, %v1054
    %v1059 = vsel %vm264, %v1051, %v1055
    %s1060 = scalar_lea.vmem %s3, 1792
    %v1061 = vld [vmem:[%s1060] sm:$0xff]
    %v1062 = vld [vmem:[%s1060 + $0x8] sm:$0xff]
    %v1063 = vld [vmem:[%s1060 + $0x10] sm:$0xff]
    %v1064 = vld [vmem:[%s1060 + $0x18] sm:$0xff]
    %v1065 = vld [vmem:[%s1060 + $0x20] sm:$0xff]
    %v1066 = vld [vmem:[%s1060 + $0x28] sm:$0xff]
    %v1067 = vld [vmem:[%s1060 + $0x30] sm:$0xff]
    %v1068 = vld [vmem:[%s1060 + $0x38] sm:$0xff]
    %v1069 = vld [vmem:[%s1060 + $0x40] sm:$0xff]
    %v1070 = vld [vmem:[%s1060 + $0x48] sm:$0xff]
    %v1071 = vld [vmem:[%s1060 + $0x50] sm:$0xff]
    %v1072 = vld [vmem:[%s1060 + $0x58] sm:$0xff]
    %v1073 = vld [vmem:[%s1060 + $0x60] sm:$0xff]
    %v1074 = vld [vmem:[%s1060 + $0x68] sm:$0xff]
    %v1075 = vld [vmem:[%s1060 + $0x70] sm:$0xff]
    %v1076 = vld [vmem:[%s1060 + $0x78] sm:$0xff]
    %v1077 = vld [vmem:[%s1060 + $0x80] sm:$0xff]
    %v1078 = vld [vmem:[%s1060 + $0x88] sm:$0xff]
    %v1079 = vld [vmem:[%s1060 + $0x90] sm:$0xff]
    %v1080 = vld [vmem:[%s1060 + $0x98] sm:$0xff]
    %v1081 = vld [vmem:[%s1060 + $0xa0] sm:$0xff]
    %v1082 = vld [vmem:[%s1060 + $0xa8] sm:$0xff]
    %v1083 = vld [vmem:[%s1060 + $0xb0] sm:$0xff]
    %v1084 = vld [vmem:[%s1060 + $0xb8] sm:$0xff]
    %v1085 = vld [vmem:[%s1060 + $0xc0] sm:$0xff]
    %v1086 = vld [vmem:[%s1060 + $0xc8] sm:$0xff]
    %v1087 = vld [vmem:[%s1060 + $0xd0] sm:$0xff]
    %v1088 = vld [vmem:[%s1060 + $0xd8] sm:$0xff]
    %v1089 = vld [vmem:[%s1060 + $0xe0] sm:$0xff]
    %v1090 = vld [vmem:[%s1060 + $0xe8] sm:$0xff]
    %v1091 = vld [vmem:[%s1060 + $0xf0] sm:$0xff]
    %v1092 = vld [vmem:[%s1060 + $0xf8] sm:$0xff]
    %1093 = vmatprep.subr.mxu0 0.0
    %1094 = vmatpush1.msra.mxu0 %v1061
    %1095 = vmatprep.subr.mxu0 0.0
    %1096 = vmatpush1.msra.mxu0 %v1062
    %1097 = vmatprep.subr.mxu0 0.0
    %1098 = vmatpush1.msra.mxu0 %v1063
    %1099 = vmatprep.subr.mxu0 0.0
    %1100 = vmatpush1.msra.mxu0 %v1064
    %1101 = vmatprep.subr.mxu0 0.0
    %1102 = vmatpush1.msra.mxu0 %v1065
    %1103 = vmatprep.subr.mxu0 0.0
    %1104 = vmatpush1.msra.mxu0 %v1066
    %1105 = vmatprep.subr.mxu0 0.0
    %1106 = vmatpush1.msra.mxu0 %v1067
    %1107 = vmatprep.subr.mxu0 0.0
    %1108 = vmatpush1.msra.mxu0 %v1068
    %1109 = vmatprep.subr.mxu0 0.0
    %1110 = vmatpush1.msra.mxu0 %v1069
    %1111 = vmatprep.subr.mxu0 0.0
    %1112 = vmatpush1.msra.mxu0 %v1070
    %1113 = vmatprep.subr.mxu0 0.0
    %1114 = vmatpush1.msra.mxu0 %v1071
    %1115 = vmatprep.subr.mxu0 0.0
    %1116 = vmatpush1.msra.mxu0 %v1072
    %1117 = vmatprep.subr.mxu0 0.0
    %1118 = vmatpush1.msra.mxu0 %v1073
    %1119 = vmatprep.subr.mxu0 0.0
    %1120 = vmatpush1.msra.mxu0 %v1074
    %1121 = vmatprep.subr.mxu0 0.0
    %1122 = vmatpush1.msra.mxu0 %v1075
    %1123 = vmatprep.subr.mxu0 0.0
    %1124 = vmatpush1.msra.mxu0 %v1076
    %1125 = vmatprep.subr.mxu0 0.0
    %1126 = vmatpush1.msra.mxu0 %v1077
    %1127 = vmatprep.subr.mxu0 0.0
    %1128 = vmatpush1.msra.mxu0 %v1078
    %1129 = vmatprep.subr.mxu0 0.0
    %1130 = vmatpush1.msra.mxu0 %v1079
    %1131 = vmatprep.subr.mxu0 0.0
    %1132 = vmatpush1.msra.mxu0 %v1080
    %1133 = vmatprep.subr.mxu0 0.0
    %1134 = vmatpush1.msra.mxu0 %v1081
    %1135 = vmatprep.subr.mxu0 0.0
    %1136 = vmatpush1.msra.mxu0 %v1082
    %1137 = vmatprep.subr.mxu0 0.0
    %1138 = vmatpush1.msra.mxu0 %v1083
    %1139 = vmatprep.subr.mxu0 0.0
    %1140 = vmatpush1.msra.mxu0 %v1084
    %1141 = vmatprep.subr.mxu0 0.0
    %1142 = vmatpush1.msra.mxu0 %v1085
    %1143 = vmatprep.subr.mxu0 0.0
    %1144 = vmatpush1.msra.mxu0 %v1086
    %1145 = vmatprep.subr.mxu0 0.0
    %1146 = vmatpush1.msra.mxu0 %v1087
    %1147 = vmatprep.subr.mxu0 0.0
    %1148 = vmatpush1.msra.mxu0 %v1088
    %1149 = vmatprep.subr.mxu0 0.0
    %1150 = vmatpush1.msra.mxu0 %v1089
    %1151 = vmatprep.subr.mxu0 0.0
    %1152 = vmatpush1.msra.mxu0 %v1090
    %1153 = vmatprep.subr.mxu0 0.0
    %1154 = vmatpush1.msra.mxu0 %v1091
    %1155 = vmatprep.subr.mxu0 0.0
    %1156 = vmatpush1.msra.mxu0 %v1092
    %1157 = vmatprep.mubr.f32.mxu0 %v1059
    %1158 = vmatmul.mubr.f32.gmra.mrb[0].mxu0 %v1058
    %v1159 = vpop.f32.mrb[0].mxu0
    %v1160 = vadd.f32 0.0, %v1159
    %v1161 = vpop.f32.mrb[0].mxu0
    %1162 = vdwg.mxu0
    %v1163 = vadd.f32 %v1049, %v1160
    %v1164 = vld [vmem:[%s5] sm:$0x1]
    %v1165 = vmul.f32 %v257, 2.0
    %v1166 = vld [vmem:[%s4] sm:$0x1]
    %v1167 = vmul.f32 %v254, %v1166
    %v1169 = vlaneseq
    %v1170 = vshrl.u32 %v1169, 7
    %v1171 = vsub.s32 0, %v1170
    %v1172 = vrot.slane %v1167, %v1171
    %v1174 = vsub.f32 %v1163, %v1172
    %v1175 = vmul.f32 %v1165, %v1174
    %v1177 = vlaneseq
    %v1178 = vshrl.u32 %v1177, 7
    %v1179 = vsub.s32 0, %v1178
    %v1180 = vrot.slane %v1164, %v1179
    %v1182 = vsub.f32 %v1180, %v1175
    %v1183 = vlaneseq
    %v1184 = vand.u32 %v1183, 127
    %vm1185 = vcmask 517120
    %v1186 = vsel %vm1185, %v1182, inf
    %1187 = vmin.xlane.f32.xlu0 %v1186
    %v1188 = vpop.xlane.xlu0 %1187
    %vm1189 = vcmp.le.f32.partialorder %v1182, %v1188
    %v1190 = vsel %vm1189, %v1184, 64
    %v1191 = vsel %vm1185, %v1190, 2147483647
    %v1192 = vand.u32 %v1191, 65535
    %v1193 = vshra.s32 %v1191, 16
    %v1194 = vcvt.s32.f32 %v1192
    %v1195 = vcvt.s32.f32 %v1193
    %1196 = vmin.xlane.f32.xlu0 %v1195
    %v1197 = vpop.xlane.xlu0 %1196
    %vm1198 = vcmp.eq.f32.partialorder %v1195, %v1197
    %v1199 = vsel %vm1198, %v1194, inf
    %1200 = vmin.xlane.f32.xlu0 %v1199
    %v1201 = vpop.xlane.xlu0 %1200
    %v1202 = vcvt.f32.s32 %v1201
    %v1203 = vcvt.f32.s32 %v1197
    %v1204 = vshll.u32 %v1203, 16
    %v1205 = vadd.s32 %v1204, %v1202
    %vm1206 = vcmp.eq.s32.totalorder %v1184, %v1205
    %v1207 = vld [vmem:[%s6] sm:$0x1]
    %v1208 = vlaneseq
    %v1209 = vshrl.u32 %v1208, 7
    %v1210 = vsub.s32 0, %v1209
    %v1211 = vrot.slane %v1207, %v1210
    %v1212 = vsel %vm1206, %v1211, 4
    %v1213 = vsel %vm1185, %v1212, 2147483647
    %v1214 = vand.u32 %v1213, 65535
    %v1215 = vshra.s32 %v1213, 16
    %v1216 = vcvt.s32.f32 %v1214
    %v1217 = vcvt.s32.f32 %v1215
    %1218 = vmin.xlane.f32.xlu0 %v1217
    %v1219 = vpop.xlane.xlu0 %1218
    %vm1220 = vcmp.eq.f32.partialorder %v1217, %v1219
    %v1221 = vsel %vm1220, %v1216, inf
    %1222 = vmin.xlane.f32.xlu0 %v1221
    %v1223 = vpop.xlane.xlu0 %1222
    %v1224 = vcvt.f32.s32 %v1223
    %v1225 = vcvt.f32.s32 %v1219
    %v1226 = vshll.u32 %v1225, 16
    %v1227 = vadd.s32 %v1226, %v1224
    %vm1228 = vcmp.eq.s32.totalorder %v1184, %v1227
    %v1229 = vsel %vm1228, 1, 0
    %v1230 = vcvt.s32.f32 %v1229
    %vm1231 = vcmask 25600
    %1232 = vst.msk [vmem:[#allocation2] sm:$0x3] %vm1231, %v1230
    // Predicated region
    $region30: #{dlsom_forward.1} parent=1 // pred_check
      _
    $region31: #{dlsom_forward.1} parent=1 // pred_check_branch
      %1234 = sbr.rel (0) target = $region33
    $region32: #{dlsom_forward.1} parent=1 // pred_region
      %s1236 = ssub.s32 32, 32
      %1237 = vsyncadd [#allocation3], %s1236
      %s1239 = sshll.u32 [#allocation2], 4
      %s1240 = int_to_ptr.vmem [resolvable:$true] %s1239
      %1242 = dma.vmem_to_hbm [thread:$0]  %s1240, 32, %s7, [#allocation3]
    $region33: #{dlsom_forward.1} parent=1 // pred_fallthru
      _
    // Predicated region
    $region34: #{dlsom_forward.1} parent=1 // pred_check
      _
    $region35: #{dlsom_forward.1} parent=1 // pred_check_branch
      %1244 = sbr.rel (0) target = $region37
    $region36: #{dlsom_forward.1} parent=1 // pred_region
      %1245 = dma.done [#allocation3], 32
    $region37: #{dlsom_forward.1} parent=1 // pred_fallthru
      _
    %1246 = vsyncpa [#allocation3], 1

</llo_original>
